<compile_context>
chip_gen: v7x
topology: tpu7x:2x2x1
jax: 0.10.0
libtpu: 0.0.40
codegen_flags: <defaults>
</compile_context>

<pallas_src>
import jax
import jax.numpy as jnp
from jax.experimental import pallas as pl
from jax.experimental.pallas import tpu as pltpu

C1 = 128          # conv1 out channels
C2 = 256          # conv2 out channels
NUM_CLASSES = 10
VOCAB_SIZE = 100  # unused in forward (kept for parity with the module)
OUT_PAD = 128     # lane-dense padded fc output width
B_BLK = 8         # samples per grid step (multiple of 8 -> aligned out stores)


def cnn_kernel(x_ref, w1_ref, b1_ref, w2_ref, b2_ref, wf_ref, bf_ref,
               out_ref, stage_ref):
    # x_ref:     (B_BLK, L, 1)        f32   time on sublanes
    # w1_ref:    (2, C1)              f32
    # b1_ref:    (1, C1)              f32
    # w2_ref:    (2*C1, C2)           bf16  [tap0.T ; tap1.T] along K
    # b2_ref:    (1, C2)              f32
    # wf_ref:    (C2, OUT_PAD)        bf16
    # bf_ref:    (1, OUT_PAD)         f32
    # out_ref:   (B_BLK, OUT_PAD)     f32
    # stage_ref: (B_BLK, T_PAD, 2*C1) bf16  im2col staging
    b_blk, L, _ = x_ref.shape
    T = L - 2
    t_pad = stage_ref.shape[1]

    # ---- conv1 (in_ch=1, kernel=2) + ReLU on the VPU, kept in f32 so the
    #      +1-row tap slice below is a plain f32 row shift (no bf16 relayout).
    x0 = x_ref[:, : L - 1, :]                 # (B_BLK, L-1, 1)
    x1 = x_ref[:, 1:, :]                      # (B_BLK, L-1, 1)
    w10 = w1_ref[0:1, :]                      # (1, C1)
    w11 = w1_ref[1:2, :]                      # (1, C1)
    y1 = x0 * w10 + x1 * w11 + b1_ref[...]    # (B_BLK, L-1, C1) f32
    y1 = jnp.maximum(y1, 0.0)

    # ---- im2col staging: both conv2 taps side-by-side on the lane axis so the
    #      two K=128 GEMMs become one K=2*C1=256 GEMM; bf16 cast fused into the
    #      stores.  Pad rows (t >= T) are never read by the pooled slice below.
    stage_ref[:, :T, :C1] = y1[:, :T, :].astype(jnp.bfloat16)   # tap k=0
    stage_ref[:, :T, C1:] = y1[:, 1:, :].astype(jnp.bfloat16)   # tap k=1

    # ---- conv2 + ReLU: one M-dense bf16 GEMM (M = B_BLK*T_PAD) with f32 acc.
    stage = stage_ref[...].reshape(b_blk * t_pad, 2 * C1)
    y2 = jnp.dot(stage, w2_ref[...], preferred_element_type=jnp.float32)
    y2 = jnp.maximum(y2 + b2_ref[...], 0.0)                     # (B_BLK*T_PAD, C2)

    # ---- AdaptiveMaxPool1d(1): per-sample global max over exactly T rows
    #      (pad rows excluded -> cannot corrupt the max).
    y2 = y2.reshape(b_blk, t_pad, C2)
    pooled = jnp.max(y2[:, :T, :], axis=1)                      # (B_BLK, C2)

    # ---- fc: single (B_BLK, C2) x (C2, OUT_PAD) GEMM, lane-dense output.
    out = jnp.dot(pooled.astype(jnp.bfloat16), wf_ref[...],
                  preferred_element_type=jnp.float32) + bf_ref[...]
    out_ref[...] = out.astype(out_ref.dtype)


def cnn_forward(x, params, *, b_blk=B_BLK):
    """x: (B, L) float32 — equivalent to torch forward on a (B, L) tensor."""
    w1, b1, w2, b2, wf, bf = params
    B, L = x.shape
    assert L >= 3, "need L >= 3 so both convs (kernel_size=2) produce output"
    assert b_blk % 8 == 0, "b_blk must be a multiple of 8 for aligned stores"
    T = L - 2
    T_PAD = ((T + 15) // 16) * 16            # bf16 sublane-tile aligned stage rows

    # ---- pad batch to a multiple of b_blk (padded rows sliced off at the end).
    Bp = pl.cdiv(B, b_blk) * b_blk
    if Bp != B:
        x = jnp.concatenate([x, jnp.zeros((Bp - B, L), x.dtype)], axis=0)

    # ---- host-side repack of PyTorch-layout parameters (glue, free).
    x_k = x.reshape(Bp, L, 1)                                  # time -> sublanes
    w1_k = jnp.transpose(w1.reshape(C1, 2))                    # (2, C1) f32
    b1_k = b1.reshape(1, C1)                                   # (1, C1) f32
    # concat both conv2 taps along K -> single (2*C1, C2) bf16 weight.
    w2_k = jnp.concatenate(
        [jnp.transpose(w2[:, :, 0]), jnp.transpose(w2[:, :, 1])],
        axis=0).astype(jnp.bfloat16)                           # (256, C2)
    b2_k = b2.reshape(1, C2)                                   # (1, C2) f32
    wf_k = jnp.zeros((C2, OUT_PAD), jnp.bfloat16).at[:, :NUM_CLASSES].set(
        jnp.transpose(wf).astype(jnp.bfloat16))                # (C2, 128) bf16
    bf_k = jnp.zeros((1, OUT_PAD), jnp.float32).at[:, :NUM_CLASSES].set(
        bf.reshape(1, -1))                                     # (1, 128) f32

    # ---- advisory cost estimate for XLA scheduling around the custom call.
    flops = (2 * Bp * T_PAD * (2 * C1) * C2        # conv2 GEMM
             + 2 * Bp * C2 * OUT_PAD               # fc GEMM
             + 4 * Bp * (L - 1) * C1)              # conv1 on the VPU
    bytes_accessed = (Bp * L * 4                   # x
                      + 2 * C1 * 4 + C1 * 4        # w1, b1
                      + 2 * C1 * C2 * 2 + C2 * 4   # w2 (bf16), b2
                      + C2 * OUT_PAD * 2 + OUT_PAD * 4   # wf (bf16), bf
                      + Bp * OUT_PAD * 4)          # out

    out_padded = pl.pallas_call(
        cnn_kernel,
        out_shape=jax.ShapeDtypeStruct((Bp, OUT_PAD), jnp.float32),
        grid_spec=pltpu.PrefetchScalarGridSpec(
            num_scalar_prefetch=0,
            grid=(Bp // b_blk,),
            in_specs=[
                pl.BlockSpec((b_blk, L, 1), lambda b: (b, 0, 0)),      # x
                pl.BlockSpec((2, C1), lambda b: (0, 0)),               # w1
                pl.BlockSpec((1, C1), lambda b: (0, 0)),               # b1
                pl.BlockSpec((2 * C1, C2), lambda b: (0, 0)),          # w2 (fused taps)
                pl.BlockSpec((1, C2), lambda b: (0, 0)),               # b2
                pl.BlockSpec((C2, OUT_PAD), lambda b: (0, 0)),         # wf (padded)
                pl.BlockSpec((1, OUT_PAD), lambda b: (0, 0)),          # bf (padded)
            ],
            out_specs=pl.BlockSpec((b_blk, OUT_PAD), lambda b: (b, 0)),
            scratch_shapes=[pltpu.VMEM((b_blk, T_PAD, 2 * C1), jnp.bfloat16)],
        ),
        compiler_params=pltpu.CompilerParams(
            dimension_semantics=("parallel",),
            vmem_limit_bytes=64 * 1024 * 1024,   # re-derive before long-L on v7x
        ),
        cost_estimate=pl.CostEstimate(flops=flops, transcendentals=0,
                                      bytes_accessed=bytes_accessed),
    )(x_k, w1_k, b1_k, w2_k, b2_k, wf_k, bf_k)

    return out_padded[:B, :NUM_CLASSES]


def ref_forward(x, params):
    """Pure-JAX f32 reference matching the PyTorch forward (NCL semantics)."""
    w1, b1, w2, b2, wf, bf = params
    # conv1: (B,1,L) -> (B,C1,L-1)
    y1 = (x[:, None, :-1] * w1[None, :, 0, 0:1]
          + x[:, None, 1:] * w1[None, :, 0, 1:2]
          + b1[None, :, None])
    y1 = jnp.maximum(y1, 0.0)
    # conv2: (B,C1,L-1) -> (B,C2,L-2)
    y2 = (jnp.einsum('bit,oi->bot', y1[:, :, :-1], w2[:, :, 0])
          + jnp.einsum('bit,oi->bot', y1[:, :, 1:], w2[:, :, 1])
          + b2[None, :, None])
    y2 = jnp.maximum(y2, 0.0)
    pooled = jnp.max(y2, axis=2)                      # (B, C2)
    return pooled @ wf.T + bf


if __name__ == "__main__":
    key = jax.random.PRNGKey(0)
    k_x, k_w1, k_b1, k_w2, k_b2, k_wf, k_bf = jax.random.split(key, 7)

    B, L = 12, 16                 # -> Bp=16, grid=(2,), exercises batch padding
    x = jax.random.normal(k_x, (B, L), dtype=jnp.float32)

    # Deterministic parameter init (PyTorch layouts: conv weight (out, in, k))
    w1 = 0.1 * jax.random.normal(k_w1, (C1, 1, 2), dtype=jnp.float32)
    b1 = 0.1 * jax.random.normal(k_b1, (C1,), dtype=jnp.float32)
    w2 = 0.05 * jax.random.normal(k_w2, (C2, C1, 2), dtype=jnp.float32)
    b2 = 0.05 * jax.random.normal(k_b2, (C2,), dtype=jnp.float32)
    wf = 0.05 * jax.random.normal(k_wf, (NUM_CLASSES, C2), dtype=jnp.float32)
    bf = 0.05 * jax.random.normal(k_bf, (NUM_CLASSES,), dtype=jnp.float32)
    params = (w1, b1, w2, b2, wf, bf)

    out = cnn_forward(x, params)
    out = jax.block_until_ready(out)

    ref = ref_forward(x, params)
    assert out.shape == (B, NUM_CLASSES)
    # bf16 GEMM operands (f32 accumulation) -> small expected drift vs f32 ref.
    assert jnp.allclose(out, ref, atol=1e-2, rtol=1e-2), "mismatch vs reference"

    print("KERNEL_OK")
</pallas_src>

<mosaic_0001>
module attributes {stable_mosaic.version = 11 : i64} {
  func.func @cnn_kernel(%arg0: i32, %arg1: memref<8x16x1xf32, #tpu.memory_space<vmem>>, %arg2: memref<2x128xf32, #tpu.memory_space<vmem>>, %arg3: memref<1x128xf32, #tpu.memory_space<vmem>>, %arg4: memref<256x256xbf16, #tpu.memory_space<vmem>>, %arg5: memref<1x256xf32, #tpu.memory_space<vmem>>, %arg6: memref<256x128xbf16, #tpu.memory_space<vmem>>, %arg7: memref<1x128xf32, #tpu.memory_space<vmem>>, %arg8: memref<8x128xf32, #tpu.memory_space<vmem>>, %arg9: memref<8x16x256xbf16, #tpu.memory_space<vmem>>) attributes {dimension_semantics = [#tpu.dimension_semantics<parallel>], iteration_bounds = array<i64: 2>, scalar_prefetch = 0 : i64, scratch_operands = 1 : i64, tpu.core_type = #tpu.core_type<tc>, window_params = [{transform_indices = @transform_0, window_bounds = array<i64: 8, 16, 1>}, {pipeline_mode = #tpu.pipeline_mode<synchronous>, transform_indices = @transform_1, window_bounds = array<i64: 2, 128>}, {pipeline_mode = #tpu.pipeline_mode<synchronous>, transform_indices = @transform_2, window_bounds = array<i64: 1, 128>}, {pipeline_mode = #tpu.pipeline_mode<synchronous>, transform_indices = @transform_3, window_bounds = array<i64: 256, 256>}, {pipeline_mode = #tpu.pipeline_mode<synchronous>, transform_indices = @transform_4, window_bounds = array<i64: 1, 256>}, {pipeline_mode = #tpu.pipeline_mode<synchronous>, transform_indices = @transform_5, window_bounds = array<i64: 256, 128>}, {pipeline_mode = #tpu.pipeline_mode<synchronous>, transform_indices = @transform_6, window_bounds = array<i64: 1, 128>}, {transform_indices = @transform_7, window_bounds = array<i64: 8, 128>}]} {
    %c0 = arith.constant 0 : index
    %c0_0 = arith.constant 0 : index
    %c0_1 = arith.constant 0 : index
    %0 = vector.load %arg1[%c0, %c0_0, %c0_1] : memref<8x16x1xf32, #tpu.memory_space<vmem>>, vector<8x15x1xf32>
    %c0_2 = arith.constant 0 : index
    %c1 = arith.constant 1 : index
    %c0_3 = arith.constant 0 : index
    %1 = vector.load %arg1[%c0_2, %c1, %c0_3] : memref<8x16x1xf32, #tpu.memory_space<vmem>>, vector<8x15x1xf32>
    %c0_4 = arith.constant 0 : index
    %c0_5 = arith.constant 0 : index
    %2 = vector.load %arg2[%c0_4, %c0_5] : memref<2x128xf32, #tpu.memory_space<vmem>>, vector<1x128xf32>
    %c1_6 = arith.constant 1 : index
    %c0_7 = arith.constant 0 : index
    %3 = vector.load %arg2[%c1_6, %c0_7] : memref<2x128xf32, #tpu.memory_space<vmem>>, vector<1x128xf32>
    %4 = vector.shape_cast %2 : vector<1x128xf32> to vector<1x1x128xf32>
    %5 = vector.broadcast %0 : vector<8x15x1xf32> to vector<8x15x128xf32>
    %6 = vector.broadcast %4 : vector<1x1x128xf32> to vector<8x15x128xf32>
    %7 = arith.mulf %5, %6 : vector<8x15x128xf32>
    %8 = vector.shape_cast %3 : vector<1x128xf32> to vector<1x1x128xf32>
    %9 = vector.broadcast %1 : vector<8x15x1xf32> to vector<8x15x128xf32>
    %10 = vector.broadcast %8 : vector<1x1x128xf32> to vector<8x15x128xf32>
    %11 = arith.mulf %9, %10 : vector<8x15x128xf32>
    %12 = arith.addf %7, %11 : vector<8x15x128xf32>
    %c0_8 = arith.constant 0 : index
    %c0_9 = arith.constant 0 : index
    %13 = vector.load %arg3[%c0_8, %c0_9] : memref<1x128xf32, #tpu.memory_space<vmem>>, vector<1x128xf32>
    %14 = vector.shape_cast %13 : vector<1x128xf32> to vector<1x1x128xf32>
    %15 = vector.broadcast %14 : vector<1x1x128xf32> to vector<8x15x128xf32>
    %16 = arith.addf %12, %15 : vector<8x15x128xf32>
    %cst = arith.constant 0.000000e+00 : f32
    %17 = vector.broadcast %cst : f32 to vector<8x15x128xf32>
    %18 = arith.maximumf %16, %17 : vector<8x15x128xf32>
    %19 = vector.extract_strided_slice %18 {offsets = [0, 0, 0], sizes = [8, 14, 128], strides = [1, 1, 1]} : vector<8x15x128xf32> to vector<8x14x128xf32>
    %20 = arith.truncf %19 : vector<8x14x128xf32> to vector<8x14x128xbf16>
    %c0_10 = arith.constant 0 : index
    %c0_11 = arith.constant 0 : index
    %c0_12 = arith.constant 0 : index
    %21 = vector.load %arg9[%c0_10, %c0_11, %c0_12] : memref<8x16x256xbf16, #tpu.memory_space<vmem>>, vector<8x14x128xbf16>
    tpu.vector_store %arg9[%c0_10, %c0_11, %c0_12], %20 {strides = array<i32>} : memref<8x16x256xbf16, #tpu.memory_space<vmem>>, vector<8x14x128xbf16>,
    %22 = vector.extract_strided_slice %18 {offsets = [0, 1, 0], sizes = [8, 14, 128], strides = [1, 1, 1]} : vector<8x15x128xf32> to vector<8x14x128xf32>
    %23 = arith.truncf %22 : vector<8x14x128xf32> to vector<8x14x128xbf16>
    %c0_13 = arith.constant 0 : index
    %c0_14 = arith.constant 0 : index
    %c128 = arith.constant 128 : index
    %24 = vector.load %arg9[%c0_13, %c0_14, %c128] : memref<8x16x256xbf16, #tpu.memory_space<vmem>>, vector<8x14x128xbf16>
    tpu.vector_store %arg9[%c0_13, %c0_14, %c128], %23 {strides = array<i32>} : memref<8x16x256xbf16, #tpu.memory_space<vmem>>, vector<8x14x128xbf16>,
    %c0_15 = arith.constant 0 : index
    %c0_16 = arith.constant 0 : index
    %c0_17 = arith.constant 0 : index
    %25 = vector.load %arg9[%c0_15, %c0_16, %c0_17] : memref<8x16x256xbf16, #tpu.memory_space<vmem>>, vector<8x16x256xbf16>
    %26 = vector.shape_cast %25 : vector<8x16x256xbf16> to vector<128x256xbf16>
    %c0_18 = arith.constant 0 : index
    %c0_19 = arith.constant 0 : index
    %27 = vector.load %arg4[%c0_18, %c0_19] : memref<256x256xbf16, #tpu.memory_space<vmem>>, vector<256x256xbf16>
    %cst_20 = arith.constant dense<0.000000e+00> : vector<128x256xf32>
    %28 = tpu.matmul %26, %27, %cst_20 {dimension_numbers = #tpu.dot_dimension_numbers<[1], [0], [0], [1], [0, 0, 1, 1], [], []>} : vector<128x256xbf16>, vector<256x256xbf16>, vector<128x256xf32> -> vector<128x256xf32>
    %c0_21 = arith.constant 0 : index
    %c0_22 = arith.constant 0 : index
    %29 = vector.load %arg5[%c0_21, %c0_22] : memref<1x256xf32, #tpu.memory_space<vmem>>, vector<1x256xf32>
    %30 = vector.broadcast %29 : vector<1x256xf32> to vector<128x256xf32>
    %31 = arith.addf %28, %30 : vector<128x256xf32>
    %cst_23 = arith.constant 0.000000e+00 : f32
    %32 = vector.broadcast %cst_23 : f32 to vector<128x256xf32>
    %33 = arith.maximumf %31, %32 : vector<128x256xf32>
    %34 = vector.shape_cast %33 : vector<128x256xf32> to vector<8x16x256xf32>
    %35 = vector.extract_strided_slice %34 {offsets = [0, 0, 0], sizes = [8, 14, 256], strides = [1, 1, 1]} : vector<8x16x256xf32> to vector<8x14x256xf32>
    %cst_24 = arith.constant dense<0xFF800000> : vector<8x256xf32>
    %36 = vector.multi_reduction <maximumf>, %35, %cst_24 [1] : vector<8x14x256xf32> to vector<8x256xf32>
    %37 = arith.truncf %36 : vector<8x256xf32> to vector<8x256xbf16>
    %c0_25 = arith.constant 0 : index
    %c0_26 = arith.constant 0 : index
    %38 = vector.load %arg6[%c0_25, %c0_26] : memref<256x128xbf16, #tpu.memory_space<vmem>>, vector<256x128xbf16>
    %cst_27 = arith.constant dense<0.000000e+00> : vector<8x128xf32>
    %39 = tpu.matmul %37, %38, %cst_27 {dimension_numbers = #tpu.dot_dimension_numbers<[1], [0], [0], [1], [0, 0, 1, 1], [], []>} : vector<8x256xbf16>, vector<256x128xbf16>, vector<8x128xf32> -> vector<8x128xf32>
    %c0_28 = arith.constant 0 : index
    %c0_29 = arith.constant 0 : index
    %40 = vector.load %arg7[%c0_28, %c0_29] : memref<1x128xf32, #tpu.memory_space<vmem>>, vector<1x128xf32>
    %41 = vector.broadcast %40 : vector<1x128xf32> to vector<8x128xf32>
    %42 = arith.addf %39, %41 : vector<8x128xf32>
    %c0_30 = arith.constant 0 : index
    %c0_31 = arith.constant 0 : index
    %43 = vector.load %arg8[%c0_30, %c0_31] : memref<8x128xf32, #tpu.memory_space<vmem>>, vector<8x128xf32>
    tpu.vector_store %arg8[%c0_30, %c0_31], %42 {strides = array<i32>} : memref<8x128xf32, #tpu.memory_space<vmem>>, vector<8x128xf32>,
    return
  }
  func.func @transform_0(%arg0: i32) -> (i32, i32, i32) {
    %c0_i32 = arith.constant 0 : i32
    %c0_i32_0 = arith.constant 0 : i32
    %c0_i32_1 = arith.constant 0 : i32
    return %arg0, %c0_i32, %c0_i32_0 : i32, i32, i32
  }
  func.func @transform_1(%arg0: i32) -> (i32, i32) {
    %c0_i32 = arith.constant 0 : i32
    %c0_i32_0 = arith.constant 0 : i32
    %c0_i32_1 = arith.constant 0 : i32
    return %c0_i32, %c0_i32_0 : i32, i32
  }
  func.func @transform_2(%arg0: i32) -> (i32, i32) {
    %c0_i32 = arith.constant 0 : i32
    %c0_i32_0 = arith.constant 0 : i32
    %c0_i32_1 = arith.constant 0 : i32
    return %c0_i32, %c0_i32_0 : i32, i32
  }
  func.func @transform_3(%arg0: i32) -> (i32, i32) {
    %c0_i32 = arith.constant 0 : i32
    %c0_i32_0 = arith.constant 0 : i32
    %c0_i32_1 = arith.constant 0 : i32
    return %c0_i32, %c0_i32_0 : i32, i32
  }
  func.func @transform_4(%arg0: i32) -> (i32, i32) {
    %c0_i32 = arith.constant 0 : i32
    %c0_i32_0 = arith.constant 0 : i32
    %c0_i32_1 = arith.constant 0 : i32
    return %c0_i32, %c0_i32_0 : i32, i32
  }
  func.func @transform_5(%arg0: i32) -> (i32, i32) {
    %c0_i32 = arith.constant 0 : i32
    %c0_i32_0 = arith.constant 0 : i32
    %c0_i32_1 = arith.constant 0 : i32
    return %c0_i32, %c0_i32_0 : i32, i32
  }
  func.func @transform_6(%arg0: i32) -> (i32, i32) {
    %c0_i32 = arith.constant 0 : i32
    %c0_i32_0 = arith.constant 0 : i32
    %c0_i32_1 = arith.constant 0 : i32
    return %c0_i32, %c0_i32_0 : i32, i32
  }
  func.func @transform_7(%arg0: i32) -> (i32, i32) {
    %c0_i32 = arith.constant 0 : i32
    %c0_i32_0 = arith.constant 0 : i32
    return %arg0, %c0_i32 : i32, i32
  }
}

</mosaic_0001>

<llo_original>
// kernel: tpu_custom_call.1
$region0: #{tpu_custom_call.1}
  #allocation0 [shape = 'u32[]', space=smem, size = 0x4, offset = 0x4, fixed_abs, tag = 'smem constant byte address 0x4 - core index']
  #allocation1 [shape = 'u32[144,128]{1,0:T(1,128)}', space=vmem, size = 0x12000, scoped, tag = 'internal scratch']
  #allocation2 [shape = 'bf16[8,16,256]{2,1,0:T(16,128)(2,1)}', space=vmem, size = 0x10000, scoped, tag = 'scratch operand']
  %s0 = inlined_call_operand.hbm [shape: f32[16,16,1], index: 0, kind: input, shape index: {}]
  %s1 = inlined_call_operand.hbm [shape: f32[2,128], index: 1, kind: input, shape index: {}]
  %s2 = inlined_call_operand.hbm [shape: f32[1,128], index: 2, kind: input, shape index: {}]
  %s3 = inlined_call_operand.hbm [shape: bf16[256,256], index: 3, kind: input, shape index: {}]
  %s4 = inlined_call_operand.hbm [shape: f32[1,256], index: 4, kind: input, shape index: {}]
  %s5 = inlined_call_operand.hbm [shape: bf16[256,128], index: 5, kind: input, shape index: {}]
  %s6 = inlined_call_operand.hbm [shape: f32[1,128], index: 6, kind: input, shape index: {}]
  %s7 = inlined_call_operand.hbm [shape: f32[16,128], index: 7, kind: output, shape index: {}]
  %s8 = sld [smem:[#allocation0]]
  $region89: #{tpu_custom_call.1} parent=0
    _
  %s10 = ssub.s32 1, %s8
  %s11 = scalar_select 0, %s10, %s8
  $region1: #{tpu_custom_call.1} parent=0
    #allocation3 [shape = 'u8[131072]{0}', space=vmem, size = 0x20000, scoped, tag = 'input window, operand 0']
    #allocation4 [shape = 's32[2]{0}', space=sflag, size = 0x8, scoped, tag = 'scoped memory for tpu_custom_call.1']
    #allocation5 [shape = 's32[2]{0}', space=sflag, size = 0x8, scoped, tag = 'scoped memory for tpu_custom_call.1']
    #allocation6 [shape = 'u8[1024]{0}', space=vmem, size = 0x400, scoped, tag = 'input window, operand 1, single buffered']
    #allocation7 [shape = 's32[1]{0}', space=sflag, size = 0x4, scoped, tag = 'scoped memory for tpu_custom_call.1']
    #allocation8 [shape = 'u8[512]{0}', space=vmem, size = 0x400, scoped, tag = 'input window, operand 2, single buffered']
    #allocation9 [shape = 'u8[131072]{0}', space=vmem, size = 0x20000, scoped, tag = 'input window, operand 3, single buffered']
    #allocation10 [shape = 's32[1]{0}', space=sflag, size = 0x4, scoped, tag = 'scoped memory for tpu_custom_call.1']
    #allocation11 [shape = 'u8[1024]{0}', space=vmem, size = 0x400, scoped, tag = 'input window, operand 4, single buffered']
    #allocation12 [shape = 'u8[65536]{0}', space=vmem, size = 0x10000, scoped, tag = 'input window, operand 5, single buffered']
    #allocation13 [shape = 's32[1]{0}', space=sflag, size = 0x4, scoped, tag = 'scoped memory for tpu_custom_call.1']
    #allocation14 [shape = 'u8[512]{0}', space=vmem, size = 0x400, scoped, tag = 'input window, operand 6, single buffered']
    #allocation15 [shape = 'u8[8192]{0}', space=vmem, size = 0x2000, scoped, tag = 'output window, operand 0']
    %12 = vsyncpa [#allocation4], 0
    %s13 = scalar_lea.sflag [#allocation4], 1
    %14 = vsyncpa %s13, 0
    %15 = vsyncpa [#allocation7], 0
    %16 = vsyncpa [#allocation10], 0
    %17 = vsyncpa [#allocation13], 0
    %18 = vsyncpa [#allocation5], 0
    %s19 = scalar_lea.sflag [#allocation5], 1
    %20 = vsyncpa %s19, 0
    loop: start=0, step=1, limit=4
    $region2: #{tpu_custom_call.1} parent=1 // loop_pre_header
      _
    $region3: #{tpu_custom_call.1} parent=1 // loop_header
      %s22 = sphi 0, %s26
      %p23 = scmp.ge.s32.totalorder %s22, 4
      %s32 = sphi 0, %s34
      %s35 = sphi 0, %s32
      %s36 = sphi 0, %s35
      %s52 = sphi 0, %s36
      %s56 = sphi 0, %s56
      %s58 = sphi 0, %s56
      %s59 = sphi 0, %s58
      %s73 = sphi 0, %s59
      %s77 = sphi 0, %s77
      %s79 = sphi 0, %s77
      %s80 = sphi 0, %s79
      %s94 = sphi 0, %s80
      %s98 = sphi 0, %s98
      %s100 = sphi 0, %s98
      %s101 = sphi 0, %s100
      %s115 = sphi 0, %s101
      %s119 = sphi 0, %s119
      %s121 = sphi 0, %s119
      %s122 = sphi 0, %s121
      %s136 = sphi 0, %s122
      %s140 = sphi 0, %s140
      %s142 = sphi 0, %s140
      %s143 = sphi 0, %s142
      %s157 = sphi 0, %s143
      %s161 = sphi 0, %s161
      %s163 = sphi 0, %s161
      %s164 = sphi 0, %s163
      %s178 = sphi 0, %s164
      %s184 = sphi 0, %s186
      %s187 = sphi 0, %s184
      %s188 = sphi 0, %s187
      %s204 = sphi 0, %s188
    $region4: #{tpu_custom_call.1} parent=1 // loop_header_branch
      %25 = sbr.rel (%p23) target = $region8
    $region5: #{tpu_custom_call.1} parent=1 // loop_body
      %s27 = ssub.s32 %s22, 1
      %s28 = ssub.s32 %s22, 2
      %s29 = sadd.s32 %s22, 1
      %s30 = ssub.s32 %s22, %s29
      %p31 = scmp.eq.s32.totalorder %s30, 0
      %s33 = sadd.s32 %s32, 1
      %s34 = scalar_select %p31, %s32, %s33
      %p37 = pneg %p31
      %p38 = scmp.eq.s32.totalorder %s22, 1
      %p39 = por %p37, %p38
      %p40 = scmp.ne.s32.totalorder %s32, %s35
      %p41 = scmp.eq.s32.totalorder %s22, 0
      %p42 = por %p40, %p41
      %p43 = scmp.ne.s32.totalorder %s32, %s35
      %p44 = scmp.eq.s32.totalorder %s27, 1
      %p45 = por %p43, %p44
      %p46 = scmp.ne.s32.totalorder %s35, %s36
      %p47 = scmp.eq.s32.totalorder %s27, 0
      %p48 = por %p46, %p47
      %p49 = scmp.ne.s32.totalorder %s35, %s36
      %p50 = scmp.eq.s32.totalorder %s28, 1
      %p51 = por %p49, %p50
      %p53 = scmp.ne.s32.totalorder %s36, %s52
      %p54 = scmp.eq.s32.totalorder %s28, 0
      %p55 = por %p53, %p54
      %s57 = sadd.s32 %s56, 1
      %p60 = scmp.eq.s32.totalorder %s22, 1
      %p61 = scmp.ne.s32.totalorder %s56, %s58
      %p62 = scmp.eq.s32.totalorder %s22, 0
      %p63 = por %p61, %p62
      %p64 = scmp.ne.s32.totalorder %s56, %s58
      %p65 = scmp.eq.s32.totalorder %s27, 1
      %p66 = por %p64, %p65
      %p67 = scmp.ne.s32.totalorder %s58, %s59
      %p68 = scmp.eq.s32.totalorder %s27, 0
      %p69 = por %p67, %p68
      %p70 = scmp.ne.s32.totalorder %s58, %s59
      %p71 = scmp.eq.s32.totalorder %s28, 1
      %p72 = por %p70, %p71
      %p74 = scmp.ne.s32.totalorder %s59, %s73
      %p75 = scmp.eq.s32.totalorder %s28, 0
      %p76 = por %p74, %p75
      %s78 = sadd.s32 %s77, 1
      %p81 = scmp.eq.s32.totalorder %s22, 1
      %p82 = scmp.ne.s32.totalorder %s77, %s79
      %p83 = scmp.eq.s32.totalorder %s22, 0
      %p84 = por %p82, %p83
      %p85 = scmp.ne.s32.totalorder %s77, %s79
      %p86 = scmp.eq.s32.totalorder %s27, 1
      %p87 = por %p85, %p86
      %p88 = scmp.ne.s32.totalorder %s79, %s80
      %p89 = scmp.eq.s32.totalorder %s27, 0
      %p90 = por %p88, %p89
      %p91 = scmp.ne.s32.totalorder %s79, %s80
      %p92 = scmp.eq.s32.totalorder %s28, 1
      %p93 = por %p91, %p92
      %p95 = scmp.ne.s32.totalorder %s80, %s94
      %p96 = scmp.eq.s32.totalorder %s28, 0
      %p97 = por %p95, %p96
      %s99 = sadd.s32 %s98, 1
      %p102 = scmp.eq.s32.totalorder %s22, 1
      %p103 = scmp.ne.s32.totalorder %s98, %s100
      %p104 = scmp.eq.s32.totalorder %s22, 0
      %p105 = por %p103, %p104
      %p106 = scmp.ne.s32.totalorder %s98, %s100
      %p107 = scmp.eq.s32.totalorder %s27, 1
      %p108 = por %p106, %p107
      %p109 = scmp.ne.s32.totalorder %s100, %s101
      %p110 = scmp.eq.s32.totalorder %s27, 0
      %p111 = por %p109, %p110
      %p112 = scmp.ne.s32.totalorder %s100, %s101
      %p113 = scmp.eq.s32.totalorder %s28, 1
      %p114 = por %p112, %p113
      %p116 = scmp.ne.s32.totalorder %s101, %s115
      %p117 = scmp.eq.s32.totalorder %s28, 0
      %p118 = por %p116, %p117
      %s120 = sadd.s32 %s119, 1
      %p123 = scmp.eq.s32.totalorder %s22, 1
      %p124 = scmp.ne.s32.totalorder %s119, %s121
      %p125 = scmp.eq.s32.totalorder %s22, 0
      %p126 = por %p124, %p125
      %p127 = scmp.ne.s32.totalorder %s119, %s121
      %p128 = scmp.eq.s32.totalorder %s27, 1
      %p129 = por %p127, %p128
      %p130 = scmp.ne.s32.totalorder %s121, %s122
      %p131 = scmp.eq.s32.totalorder %s27, 0
      %p132 = por %p130, %p131
      %p133 = scmp.ne.s32.totalorder %s121, %s122
      %p134 = scmp.eq.s32.totalorder %s28, 1
      %p135 = por %p133, %p134
      %p137 = scmp.ne.s32.totalorder %s122, %s136
      %p138 = scmp.eq.s32.totalorder %s28, 0
      %p139 = por %p137, %p138
      %s141 = sadd.s32 %s140, 1
      %p144 = scmp.eq.s32.totalorder %s22, 1
      %p145 = scmp.ne.s32.totalorder %s140, %s142
      %p146 = scmp.eq.s32.totalorder %s22, 0
      %p147 = por %p145, %p146
      %p148 = scmp.ne.s32.totalorder %s140, %s142
      %p149 = scmp.eq.s32.totalorder %s27, 1
      %p150 = por %p148, %p149
      %p151 = scmp.ne.s32.totalorder %s142, %s143
      %p152 = scmp.eq.s32.totalorder %s27, 0
      %p153 = por %p151, %p152
      %p154 = scmp.ne.s32.totalorder %s142, %s143
      %p155 = scmp.eq.s32.totalorder %s28, 1
      %p156 = por %p154, %p155
      %p158 = scmp.ne.s32.totalorder %s143, %s157
      %p159 = scmp.eq.s32.totalorder %s28, 0
      %p160 = por %p158, %p159
      %s162 = sadd.s32 %s161, 1
      %p165 = scmp.eq.s32.totalorder %s22, 1
      %p166 = scmp.ne.s32.totalorder %s161, %s163
      %p167 = scmp.eq.s32.totalorder %s22, 0
      %p168 = por %p166, %p167
      %p169 = scmp.ne.s32.totalorder %s161, %s163
      %p170 = scmp.eq.s32.totalorder %s27, 1
      %p171 = por %p169, %p170
      %p172 = scmp.ne.s32.totalorder %s163, %s164
      %p173 = scmp.eq.s32.totalorder %s27, 0
      %p174 = por %p172, %p173
      %p175 = scmp.ne.s32.totalorder %s163, %s164
      %p176 = scmp.eq.s32.totalorder %s28, 1
      %p177 = por %p175, %p176
      %p179 = scmp.ne.s32.totalorder %s164, %s178
      %p180 = scmp.eq.s32.totalorder %s28, 0
      %p181 = por %p179, %p180
      %s182 = ssub.s32 %s22, %s29
      %p183 = scmp.eq.s32.totalorder %s182, 0
      %s185 = sadd.s32 %s184, 1
      %s186 = scalar_select %p183, %s184, %s185
      %p189 = pneg %p183
      %p190 = scmp.eq.s32.totalorder %s22, 1
      %p191 = por %p189, %p190
      %p192 = scmp.ne.s32.totalorder %s184, %s187
      %p193 = scmp.eq.s32.totalorder %s22, 0
      %p194 = por %p192, %p193
      %p195 = scmp.ne.s32.totalorder %s184, %s187
      %p196 = scmp.eq.s32.totalorder %s27, 1
      %p197 = por %p195, %p196
      %p198 = scmp.ne.s32.totalorder %s187, %s188
      %p199 = scmp.eq.s32.totalorder %s27, 0
      %p200 = por %p198, %p199
      %p201 = scmp.ne.s32.totalorder %s187, %s188
      %p202 = scmp.eq.s32.totalorder %s28, 1
      %p203 = por %p201, %p202
      %p205 = scmp.ne.s32.totalorder %s188, %s204
      %p206 = scmp.eq.s32.totalorder %s28, 0
      %p207 = por %p205, %p206
      %p208 = scmp.le.s32.totalorder 1, %s22
      %p209 = scmp.lt.s32.totalorder %s22, 3
      %p210 = pnand %p208, %p209
      %p211 = pneg %p210
      // Predicated region
      $region9: #{tpu_custom_call.1} parent=5 // pred_check
        _
      $region10: #{tpu_custom_call.1} parent=5 // pred_check_branch
        %213 = sbr.rel (%p210) target = $region12
      $region11: #{tpu_custom_call.1} parent=5 // pred_region
        %s214 = ssub.s32 %s22, 1
        // Predicated region
        $region13: #{tpu_custom_call.1} parent=11 // pred_check
          %p215 = pneg %p69
        $region14: #{tpu_custom_call.1} parent=11 // pred_check_branch
          %217 = sbr.rel (%p215) target = $region16
        $region15: #{tpu_custom_call.1} parent=11 // pred_region
          %s219 = ssub.s32 32, 32
          %220 = vsyncadd [#allocation7], %s219
          %s222 = sshll.u32 [#allocation6], 4
          %s223 = int_to_ptr.vmem [resolvable:$true] %s222
          %225 = dma.hbm_to_vmem [thread:$0]  %s1, 32, %s223, [#allocation7]
        $region16: #{tpu_custom_call.1} parent=11 // pred_fallthru
          _
        // Predicated region
        $region17: #{tpu_custom_call.1} parent=11 // pred_check
          %p226 = pneg %p90
        $region18: #{tpu_custom_call.1} parent=11 // pred_check_branch
          %228 = sbr.rel (%p226) target = $region20
        $region19: #{tpu_custom_call.1} parent=11 // pred_region
          %s230 = ssub.s32 16, 16
          %231 = vsyncadd [#allocation7], %s230
          %s233 = sshll.u32 [#allocation8], 4
          %s234 = int_to_ptr.vmem [resolvable:$true] %s233
          %236 = dma.hbm_to_vmem [thread:$0]  %s2, 16, %s234, [#allocation7]
        $region20: #{tpu_custom_call.1} parent=11 // pred_fallthru
          _
        // Predicated region
        $region21: #{tpu_custom_call.1} parent=11 // pred_check
          %p237 = pneg %p111
        $region22: #{tpu_custom_call.1} parent=11 // pred_check_branch
          %239 = sbr.rel (%p237) target = $region24
        $region23: #{tpu_custom_call.1} parent=11 // pred_region
          %s241 = ssub.s32 4096, 4096
          %242 = vsyncadd [#allocation10], %s241
          %s243 = sshll.u32 [#allocation9], 4
          %s244 = int_to_ptr.vmem [resolvable:$true] %s243
          %249 = dma.hbm_to_vmem [thread:$0]  %s3, 4096, %s244, [#allocation10], 128, 128, 8
        $region24: #{tpu_custom_call.1} parent=11 // pred_fallthru
          _
        // Predicated region
        $region25: #{tpu_custom_call.1} parent=11 // pred_check
          %p250 = pneg %p132
        $region26: #{tpu_custom_call.1} parent=11 // pred_check_branch
          %252 = sbr.rel (%p250) target = $region28
        $region27: #{tpu_custom_call.1} parent=11 // pred_region
          %s254 = ssub.s32 32, 32
          %255 = vsyncadd [#allocation10], %s254
          %s257 = sshll.u32 [#allocation11], 4
          %s258 = int_to_ptr.vmem [resolvable:$true] %s257
          %260 = dma.hbm_to_vmem [thread:$0]  %s4, 32, %s258, [#allocation10]
        $region28: #{tpu_custom_call.1} parent=11 // pred_fallthru
          _
        // Predicated region
        $region29: #{tpu_custom_call.1} parent=11 // pred_check
          %p261 = pneg %p153
        $region30: #{tpu_custom_call.1} parent=11 // pred_check_branch
          %263 = sbr.rel (%p261) target = $region32
        $region31: #{tpu_custom_call.1} parent=11 // pred_region
          %s265 = ssub.s32 2048, 2048
          %266 = vsyncadd [#allocation13], %s265
          %s267 = sshll.u32 [#allocation12], 4
          %s268 = int_to_ptr.vmem [resolvable:$true] %s267
          %273 = dma.hbm_to_vmem [thread:$0]  %s5, 2048, %s268, [#allocation13], 64, 64, 4
        $region32: #{tpu_custom_call.1} parent=11 // pred_fallthru
          _
        // Predicated region
        $region33: #{tpu_custom_call.1} parent=11 // pred_check
          %p274 = pneg %p174
        $region34: #{tpu_custom_call.1} parent=11 // pred_check_branch
          %276 = sbr.rel (%p274) target = $region36
        $region35: #{tpu_custom_call.1} parent=11 // pred_region
          %s278 = ssub.s32 16, 16
          %279 = vsyncadd [#allocation13], %s278
          %s281 = sshll.u32 [#allocation14], 4
          %s282 = int_to_ptr.vmem [resolvable:$true] %s281
          %284 = dma.hbm_to_vmem [thread:$0]  %s6, 16, %s282, [#allocation13]
        $region36: #{tpu_custom_call.1} parent=11 // pred_fallthru
          _
      $region12: #{tpu_custom_call.1} parent=5 // pred_fallthru
        _
      %p285 = scmp.lt.s32.totalorder %s22, 2
      // Predicated region
      $region37: #{tpu_custom_call.1} parent=5 // pred_check
        %p286 = pneg %p285
      $region38: #{tpu_custom_call.1} parent=5 // pred_check_branch
        %288 = sbr.rel (%p286) target = $region40
      $region39: #{tpu_custom_call.1} parent=5 // pred_region
        // Predicated region
        $region41: #{tpu_custom_call.1} parent=39 // pred_check
          %p289 = pneg %p42
        $region42: #{tpu_custom_call.1} parent=39 // pred_check_branch
          %291 = sbr.rel (%p289) target = $region44
        $region43: #{tpu_custom_call.1} parent=39 // pred_region
          %s292 = sand.u32 %s32, 1
          %s293 = scalar_lea.sflag [#allocation4], %s292
          %s294 = sand.u32 %s32, 1
          %s295 = smul.addr %s294, 128
          %s296 = scalar_lea.vmem [#allocation3], %s295
          %s297 = smul.u32 8, %s22
          %s299 = ssub.s32 2048, 2048
          %300 = vsyncadd %s293, %s299
          %s301 = smul.addr %s297, 2
          %s302 = smul.addr %s301, 128
          %s303 = scalar_lea.hbm %s0, %s302
          %s304 = sshll.u32 %s296, 4
          %s305 = int_to_ptr.vmem [resolvable:$true] %s304
          %310 = dma.hbm_to_vmem [thread:$0]  %s303, 2048, %s305, %s293, 128, 128, 8
        $region44: #{tpu_custom_call.1} parent=39 // pred_fallthru
          _
      $region40: #{tpu_custom_call.1} parent=5 // pred_fallthru
        _
      %p311 = scmp.le.s32.totalorder 1, %s22
      %p312 = scmp.lt.s32.totalorder %s22, 3
      %p313 = pnand %p311, %p312
      %p314 = pneg %p313
      // Predicated region
      $region45: #{tpu_custom_call.1} parent=5 // pred_check
        _
      $region46: #{tpu_custom_call.1} parent=5 // pred_check_branch
        %316 = sbr.rel (%p313) target = $region48
      $region47: #{tpu_custom_call.1} parent=5 // pred_region
        %s317 = ssub.s32 %s22, 1
        %s318 = sand.u32 %s35, 1
        %s319 = scalar_lea.sflag [#allocation4], %s318
        %s320 = sand.u32 %s35, 1
        %s321 = smul.addr %s320, 128
        %s322 = scalar_lea.vmem [#allocation3], %s321
        // Predicated region
        $region49: #{tpu_custom_call.1} parent=47 // pred_check
          %p323 = pneg %p48
        $region50: #{tpu_custom_call.1} parent=47 // pred_check_branch
          %325 = sbr.rel (%p323) target = $region52
        $region51: #{tpu_custom_call.1} parent=47 // pred_region
          %326 = dma.done %s319, 2048
        $region52: #{tpu_custom_call.1} parent=47 // pred_fallthru
          _
        // Predicated region
        $region53: #{tpu_custom_call.1} parent=47 // pred_check
          %p327 = pneg %p69
        $region54: #{tpu_custom_call.1} parent=47 // pred_check_branch
          %329 = sbr.rel (%p327) target = $region56
        $region55: #{tpu_custom_call.1} parent=47 // pred_region
          %330 = dma.done [#allocation7], 32
        $region56: #{tpu_custom_call.1} parent=47 // pred_fallthru
          _
        // Predicated region
        $region57: #{tpu_custom_call.1} parent=47 // pred_check
          %p331 = pneg %p90
        $region58: #{tpu_custom_call.1} parent=47 // pred_check_branch
          %333 = sbr.rel (%p331) target = $region60
        $region59: #{tpu_custom_call.1} parent=47 // pred_region
          %334 = dma.done [#allocation7], 16
        $region60: #{tpu_custom_call.1} parent=47 // pred_fallthru
          _
        // Predicated region
        $region61: #{tpu_custom_call.1} parent=47 // pred_check
          %p335 = pneg %p111
        $region62: #{tpu_custom_call.1} parent=47 // pred_check_branch
          %337 = sbr.rel (%p335) target = $region64
        $region63: #{tpu_custom_call.1} parent=47 // pred_region
          %338 = dma.done [#allocation10], 4096
        $region64: #{tpu_custom_call.1} parent=47 // pred_fallthru
          _
        // Predicated region
        $region65: #{tpu_custom_call.1} parent=47 // pred_check
          %p339 = pneg %p132
        $region66: #{tpu_custom_call.1} parent=47 // pred_check_branch
          %341 = sbr.rel (%p339) target = $region68
        $region67: #{tpu_custom_call.1} parent=47 // pred_region
          %342 = dma.done [#allocation10], 32
        $region68: #{tpu_custom_call.1} parent=47 // pred_fallthru
          _
        // Predicated region
        $region69: #{tpu_custom_call.1} parent=47 // pred_check
          %p343 = pneg %p153
        $region70: #{tpu_custom_call.1} parent=47 // pred_check_branch
          %345 = sbr.rel (%p343) target = $region72
        $region71: #{tpu_custom_call.1} parent=47 // pred_region
          %346 = dma.done [#allocation13], 2048
        $region72: #{tpu_custom_call.1} parent=47 // pred_fallthru
          _
        // Predicated region
        $region73: #{tpu_custom_call.1} parent=47 // pred_check
          %p347 = pneg %p174
        $region74: #{tpu_custom_call.1} parent=47 // pred_check_branch
          %349 = sbr.rel (%p347) target = $region76
        $region75: #{tpu_custom_call.1} parent=47 // pred_region
          %350 = dma.done [#allocation13], 16
        $region76: #{tpu_custom_call.1} parent=47 // pred_fallthru
          _
        %s351 = sand.u32 %s35, 1
        %s352 = scalar_lea.sflag [#allocation4], %s351
        %s353 = sand.u32 %s35, 1
        %s354 = smul.addr %s353, 128
        %s355 = scalar_lea.vmem [#allocation3], %s354
        %p356 = pneg %p48
        %p357 = pneg %p45
        %p358 = pneg %p69
        %p359 = pneg %p66
        %p360 = pneg %p90
        %p361 = pneg %p87
        %p362 = pneg %p111
        %p363 = pneg %p108
        %p364 = pneg %p132
        %p365 = pneg %p129
        %p366 = pneg %p153
        %p367 = pneg %p150
        %p368 = pneg %p174
        %p369 = pneg %p171
        %p370 = pneg %p200
        %p371 = pneg %p197
        %s372 = sand.u32 %s187, 1
        %s373 = scalar_lea.sflag [#allocation5], %s372
        %s374 = sand.u32 %s187, 1
        %s375 = smul.addr %s374, 8
        %s376 = scalar_lea.vmem [#allocation15], %s375
        %s377 = smul.u32 8, %s27
        %v379 = vld [vmem:[%s322] sm:$0xff]
        %v380 = vld [vmem:[%s322 + $0x8] sm:$0x7f]
        %v381 = vld [vmem:[%s322 + $0x10] sm:$0xff]
        %v382 = vld [vmem:[%s322 + $0x18] sm:$0x7f]
        %v383 = vld [vmem:[%s322 + $0x20] sm:$0xff]
        %v384 = vld [vmem:[%s322 + $0x28] sm:$0x7f]
        %v385 = vld [vmem:[%s322 + $0x30] sm:$0xff]
        %v386 = vld [vmem:[%s322 + $0x38] sm:$0x7f]
        %v387 = vld [vmem:[%s322 + $0x40] sm:$0xff]
        %v388 = vld [vmem:[%s322 + $0x48] sm:$0x7f]
        %v389 = vld [vmem:[%s322 + $0x50] sm:$0xff]
        %v390 = vld [vmem:[%s322 + $0x58] sm:$0x7f]
        %v391 = vld [vmem:[%s322 + $0x60] sm:$0xff]
        %v392 = vld [vmem:[%s322 + $0x68] sm:$0x7f]
        %v393 = vld [vmem:[%s322 + $0x70] sm:$0xff]
        %v394 = vld [vmem:[%s322 + $0x78] sm:$0x7f]
        %v395 = vld [vmem:[%s322 + $0x1] sm:$0xff]
        %v396 = vld [vmem:[%s322 + $0x9] sm:$0x7f]
        %v397 = vld [vmem:[%s322 + $0x11] sm:$0xff]
        %v398 = vld [vmem:[%s322 + $0x19] sm:$0x7f]
        %v399 = vld [vmem:[%s322 + $0x21] sm:$0xff]
        %v400 = vld [vmem:[%s322 + $0x29] sm:$0x7f]
        %v401 = vld [vmem:[%s322 + $0x31] sm:$0xff]
        %v402 = vld [vmem:[%s322 + $0x39] sm:$0x7f]
        %v403 = vld [vmem:[%s322 + $0x41] sm:$0xff]
        %v404 = vld [vmem:[%s322 + $0x49] sm:$0x7f]
        %v405 = vld [vmem:[%s322 + $0x51] sm:$0xff]
        %v406 = vld [vmem:[%s322 + $0x59] sm:$0x7f]
        %v407 = vld [vmem:[%s322 + $0x61] sm:$0xff]
        %v408 = vld [vmem:[%s322 + $0x69] sm:$0x7f]
        %v409 = vld [vmem:[%s322 + $0x71] sm:$0xff]
        %v410 = vld [vmem:[%s322 + $0x79] sm:$0x7f]
        %v411 = vld [vmem:[#allocation6] sm:$0x1]
        %v412 = vld [vmem:[#allocation6 + $0x1] sm:$0x1]
        %414 = vset.pattern.permute.xlu0 0
        %415 = vperm.xlu0 %414, %v379
        %v416 = vpop.permute.xlu0 %415
        %419 = vset.pattern.permute.xlu0 0
        %420 = vperm.xlu0 %419, %v380
        %v421 = vpop.permute.xlu0 %420
        %424 = vset.pattern.permute.xlu0 0
        %425 = vperm.xlu0 %424, %v381
        %v426 = vpop.permute.xlu0 %425
        %429 = vset.pattern.permute.xlu0 0
        %430 = vperm.xlu0 %429, %v382
        %v431 = vpop.permute.xlu0 %430
        %434 = vset.pattern.permute.xlu0 0
        %435 = vperm.xlu0 %434, %v383
        %v436 = vpop.permute.xlu0 %435
        %439 = vset.pattern.permute.xlu0 0
        %440 = vperm.xlu0 %439, %v384
        %v441 = vpop.permute.xlu0 %440
        %444 = vset.pattern.permute.xlu0 0
        %445 = vperm.xlu0 %444, %v385
        %v446 = vpop.permute.xlu0 %445
        %449 = vset.pattern.permute.xlu0 0
        %450 = vperm.xlu0 %449, %v386
        %v451 = vpop.permute.xlu0 %450
        %454 = vset.pattern.permute.xlu0 0
        %455 = vperm.xlu0 %454, %v387
        %v456 = vpop.permute.xlu0 %455
        %459 = vset.pattern.permute.xlu0 0
        %460 = vperm.xlu0 %459, %v388
        %v461 = vpop.permute.xlu0 %460
        %464 = vset.pattern.permute.xlu0 0
        %465 = vperm.xlu0 %464, %v389
        %v466 = vpop.permute.xlu0 %465
        %469 = vset.pattern.permute.xlu0 0
        %470 = vperm.xlu0 %469, %v390
        %v471 = vpop.permute.xlu0 %470
        %474 = vset.pattern.permute.xlu0 0
        %475 = vperm.xlu0 %474, %v391
        %v476 = vpop.permute.xlu0 %475
        %479 = vset.pattern.permute.xlu0 0
        %480 = vperm.xlu0 %479, %v392
        %v481 = vpop.permute.xlu0 %480
        %484 = vset.pattern.permute.xlu0 0
        %485 = vperm.xlu0 %484, %v393
        %v486 = vpop.permute.xlu0 %485
        %489 = vset.pattern.permute.xlu0 0
        %490 = vperm.xlu0 %489, %v394
        %v491 = vpop.permute.xlu0 %490
        %v493 = vlaneseq
        %v494 = vshrl.u32 %v493, 7
        %v495 = vsub.s32 0, %v494
        %v496 = vrot.slane %v411, %v495
        %v497 = vmul.f32 %v416, %v496
        %v498 = vmul.f32 %v421, %v496
        %v499 = vmul.f32 %v426, %v496
        %v500 = vmul.f32 %v431, %v496
        %v501 = vmul.f32 %v436, %v496
        %v502 = vmul.f32 %v441, %v496
        %v503 = vmul.f32 %v446, %v496
        %v504 = vmul.f32 %v451, %v496
        %v505 = vmul.f32 %v456, %v496
        %v506 = vmul.f32 %v461, %v496
        %v507 = vmul.f32 %v466, %v496
        %v508 = vmul.f32 %v471, %v496
        %v509 = vmul.f32 %v476, %v496
        %v510 = vmul.f32 %v481, %v496
        %v511 = vmul.f32 %v486, %v496
        %v512 = vmul.f32 %v491, %v496
        %514 = vset.pattern.permute.xlu0 0
        %515 = vperm.xlu0 %514, %v395
        %v516 = vpop.permute.xlu0 %515
        %519 = vset.pattern.permute.xlu0 0
        %520 = vperm.xlu0 %519, %v396
        %v521 = vpop.permute.xlu0 %520
        %524 = vset.pattern.permute.xlu0 0
        %525 = vperm.xlu0 %524, %v397
        %v526 = vpop.permute.xlu0 %525
        %529 = vset.pattern.permute.xlu0 0
        %530 = vperm.xlu0 %529, %v398
        %v531 = vpop.permute.xlu0 %530
        %534 = vset.pattern.permute.xlu0 0
        %535 = vperm.xlu0 %534, %v399
        %v536 = vpop.permute.xlu0 %535
        %539 = vset.pattern.permute.xlu0 0
        %540 = vperm.xlu0 %539, %v400
        %v541 = vpop.permute.xlu0 %540
        %544 = vset.pattern.permute.xlu0 0
        %545 = vperm.xlu0 %544, %v401
        %v546 = vpop.permute.xlu0 %545
        %549 = vset.pattern.permute.xlu0 0
        %550 = vperm.xlu0 %549, %v402
        %v551 = vpop.permute.xlu0 %550
        %554 = vset.pattern.permute.xlu0 0
        %555 = vperm.xlu0 %554, %v403
        %v556 = vpop.permute.xlu0 %555
        %559 = vset.pattern.permute.xlu0 0
        %560 = vperm.xlu0 %559, %v404
        %v561 = vpop.permute.xlu0 %560
        %564 = vset.pattern.permute.xlu0 0
        %565 = vperm.xlu0 %564, %v405
        %v566 = vpop.permute.xlu0 %565
        %569 = vset.pattern.permute.xlu0 0
        %570 = vperm.xlu0 %569, %v406
        %v571 = vpop.permute.xlu0 %570
        %574 = vset.pattern.permute.xlu0 0
        %575 = vperm.xlu0 %574, %v407
        %v576 = vpop.permute.xlu0 %575
        %579 = vset.pattern.permute.xlu0 0
        %580 = vperm.xlu0 %579, %v408
        %v581 = vpop.permute.xlu0 %580
        %584 = vset.pattern.permute.xlu0 0
        %585 = vperm.xlu0 %584, %v409
        %v586 = vpop.permute.xlu0 %585
        %589 = vset.pattern.permute.xlu0 0
        %590 = vperm.xlu0 %589, %v410
        %v591 = vpop.permute.xlu0 %590
        %v593 = vlaneseq
        %v594 = vshrl.u32 %v593, 7
        %v595 = vsub.s32 0, %v594
        %v596 = vrot.slane %v412, %v595
        %v597 = vmul.f32 %v516, %v596
        %v598 = vmul.f32 %v521, %v596
        %v599 = vmul.f32 %v526, %v596
        %v600 = vmul.f32 %v531, %v596
        %v601 = vmul.f32 %v536, %v596
        %v602 = vmul.f32 %v541, %v596
        %v603 = vmul.f32 %v546, %v596
        %v604 = vmul.f32 %v551, %v596
        %v605 = vmul.f32 %v556, %v596
        %v606 = vmul.f32 %v561, %v596
        %v607 = vmul.f32 %v566, %v596
        %v608 = vmul.f32 %v571, %v596
        %v609 = vmul.f32 %v576, %v596
        %v610 = vmul.f32 %v581, %v596
        %v611 = vmul.f32 %v586, %v596
        %v612 = vmul.f32 %v591, %v596
        %v613 = vadd.f32 %v497, %v597
        %v614 = vadd.f32 %v498, %v598
        %v615 = vadd.f32 %v499, %v599
        %v616 = vadd.f32 %v500, %v600
        %v617 = vadd.f32 %v501, %v601
        %v618 = vadd.f32 %v502, %v602
        %v619 = vadd.f32 %v503, %v603
        %v620 = vadd.f32 %v504, %v604
        %v621 = vadd.f32 %v505, %v605
        %v622 = vadd.f32 %v506, %v606
        %v623 = vadd.f32 %v507, %v607
        %v624 = vadd.f32 %v508, %v608
        %v625 = vadd.f32 %v509, %v609
        %v626 = vadd.f32 %v510, %v610
        %v627 = vadd.f32 %v511, %v611
        %v628 = vadd.f32 %v512, %v612
        %v629 = vld [vmem:[#allocation8] sm:$0x1]
        %v631 = vlaneseq
        %v632 = vshrl.u32 %v631, 7
        %v633 = vsub.s32 0, %v632
        %v634 = vrot.slane %v629, %v633
        %v636 = vadd.f32 %v613, %v634
        %v637 = vadd.f32 %v614, %v634
        %v638 = vadd.f32 %v615, %v634
        %v639 = vadd.f32 %v616, %v634
        %v640 = vadd.f32 %v617, %v634
        %v641 = vadd.f32 %v618, %v634
        %v642 = vadd.f32 %v619, %v634
        %v643 = vadd.f32 %v620, %v634
        %v644 = vadd.f32 %v621, %v634
        %v645 = vadd.f32 %v622, %v634
        %v646 = vadd.f32 %v623, %v634
        %v647 = vadd.f32 %v624, %v634
        %v648 = vadd.f32 %v625, %v634
        %v649 = vadd.f32 %v626, %v634
        %v650 = vadd.f32 %v627, %v634
        %v651 = vadd.f32 %v628, %v634
        %v652 = vmax.f32 %v636, 0.0
        %v653 = vmax.f32 %v637, 0.0
        %v654 = vmax.f32 %v638, 0.0
        %v655 = vmax.f32 %v639, 0.0
        %v656 = vmax.f32 %v640, 0.0
        %v657 = vmax.f32 %v641, 0.0
        %v658 = vmax.f32 %v642, 0.0
        %v659 = vmax.f32 %v643, 0.0
        %v660 = vmax.f32 %v644, 0.0
        %v661 = vmax.f32 %v645, 0.0
        %v662 = vmax.f32 %v646, 0.0
        %v663 = vmax.f32 %v647, 0.0
        %v664 = vmax.f32 %v648, 0.0
        %v665 = vmax.f32 %v649, 0.0
        %v666 = vmax.f32 %v650, 0.0
        %v667 = vmax.f32 %v651, 0.0
        %v668 = vpack.c.bf16 %v653, %v652
        %v669 = vpack.c.bf16 %v655, %v654
        %v670 = vpack.c.bf16 %v657, %v656
        %v671 = vpack.c.bf16 %v659, %v658
        %v672 = vpack.c.bf16 %v661, %v660
        %v673 = vpack.c.bf16 %v663, %v662
        %v674 = vpack.c.bf16 %v665, %v664
        %v675 = vpack.c.bf16 %v667, %v666
        %676 = vst [vmem:[#allocation2] sm:$0x7f] %v668
        %677 = vst [vmem:[#allocation2 + $0x10] sm:$0x7f] %v669
        %678 = vst [vmem:[#allocation2 + $0x20] sm:$0x7f] %v670
        %679 = vst [vmem:[#allocation2 + $0x30] sm:$0x7f] %v671
        %680 = vst [vmem:[#allocation2 + $0x40] sm:$0x7f] %v672
        %681 = vst [vmem:[#allocation2 + $0x50] sm:$0x7f] %v673
        %682 = vst [vmem:[#allocation2 + $0x60] sm:$0x7f] %v674
        %683 = vst [vmem:[#allocation2 + $0x70] sm:$0x7f] %v675
        %v685 = vshrl.u32 %v668, 16
        %v687 = vshll.u32 %v668, 16
        %v689 = vrot.slane %v687, 1
        %v690 = vor.u32 %v685, %v689
        %v692 = vshrl.u32 %v669, 16
        %v694 = vshll.u32 %v669, 16
        %v696 = vrot.slane %v694, 1
        %v697 = vor.u32 %v692, %v696
        %v699 = vshrl.u32 %v670, 16
        %v701 = vshll.u32 %v670, 16
        %v703 = vrot.slane %v701, 1
        %v704 = vor.u32 %v699, %v703
        %v706 = vshrl.u32 %v671, 16
        %v708 = vshll.u32 %v671, 16
        %v710 = vrot.slane %v708, 1
        %v711 = vor.u32 %v706, %v710
        %v713 = vshrl.u32 %v672, 16
        %v715 = vshll.u32 %v672, 16
        %v717 = vrot.slane %v715, 1
        %v718 = vor.u32 %v713, %v717
        %v720 = vshrl.u32 %v673, 16
        %v722 = vshll.u32 %v673, 16
        %v724 = vrot.slane %v722, 1
        %v725 = vor.u32 %v720, %v724
        %v727 = vshrl.u32 %v674, 16
        %v729 = vshll.u32 %v674, 16
        %v731 = vrot.slane %v729, 1
        %v732 = vor.u32 %v727, %v731
        %v734 = vshrl.u32 %v675, 16
        %v736 = vshll.u32 %v675, 16
        %v738 = vrot.slane %v736, 1
        %v739 = vor.u32 %v734, %v738
        %748 = vst [vmem:[#allocation2 + $0x8] sm:$0x7f] %v690
        %749 = vst [vmem:[#allocation2 + $0x18] sm:$0x7f] %v697
        %750 = vst [vmem:[#allocation2 + $0x28] sm:$0x7f] %v704
        %751 = vst [vmem:[#allocation2 + $0x38] sm:$0x7f] %v711
        %752 = vst [vmem:[#allocation2 + $0x48] sm:$0x7f] %v718
        %753 = vst [vmem:[#allocation2 + $0x58] sm:$0x7f] %v725
        %754 = vst [vmem:[#allocation2 + $0x68] sm:$0x7f] %v732
        %755 = vst [vmem:[#allocation2 + $0x78] sm:$0x7f] %v739
        %v756 = vld [vmem:[#allocation2] sm:$0xff]
        %v757 = vld [vmem:[#allocation2 + $0x8] sm:$0xff]
        %v758 = vld [vmem:[#allocation2 + $0x10] sm:$0xff]
        %v759 = vld [vmem:[#allocation2 + $0x18] sm:$0xff]
        %v760 = vld [vmem:[#allocation2 + $0x20] sm:$0xff]
        %v761 = vld [vmem:[#allocation2 + $0x28] sm:$0xff]
        %v762 = vld [vmem:[#allocation2 + $0x30] sm:$0xff]
        %v763 = vld [vmem:[#allocation2 + $0x38] sm:$0xff]
        %v764 = vld [vmem:[#allocation2 + $0x40] sm:$0xff]
        %v765 = vld [vmem:[#allocation2 + $0x48] sm:$0xff]
        %v766 = vld [vmem:[#allocation2 + $0x50] sm:$0xff]
        %v767 = vld [vmem:[#allocation2 + $0x58] sm:$0xff]
        %v768 = vld [vmem:[#allocation2 + $0x60] sm:$0xff]
        %v769 = vld [vmem:[#allocation2 + $0x68] sm:$0xff]
        %v770 = vld [vmem:[#allocation2 + $0x70] sm:$0xff]
        %v771 = vld [vmem:[#allocation2 + $0x78] sm:$0xff]
        %v772 = vld [vmem:[#allocation9] sm:$0xff]
        %v773 = vld [vmem:[#allocation9 + $0x8] sm:$0xff]
        %v774 = vld [vmem:[#allocation9 + $0x10] sm:$0xff]
        %v775 = vld [vmem:[#allocation9 + $0x18] sm:$0xff]
        %v776 = vld [vmem:[#allocation9 + $0x20] sm:$0xff]
        %v777 = vld [vmem:[#allocation9 + $0x28] sm:$0xff]
        %v778 = vld [vmem:[#allocation9 + $0x30] sm:$0xff]
        %v779 = vld [vmem:[#allocation9 + $0x38] sm:$0xff]
        %v780 = vld [vmem:[#allocation9 + $0x40] sm:$0xff]
        %v781 = vld [vmem:[#allocation9 + $0x48] sm:$0xff]
        %v782 = vld [vmem:[#allocation9 + $0x50] sm:$0xff]
        %v783 = vld [vmem:[#allocation9 + $0x58] sm:$0xff]
        %v784 = vld [vmem:[#allocation9 + $0x60] sm:$0xff]
        %v785 = vld [vmem:[#allocation9 + $0x68] sm:$0xff]
        %v786 = vld [vmem:[#allocation9 + $0x70] sm:$0xff]
        %v787 = vld [vmem:[#allocation9 + $0x78] sm:$0xff]
        %v788 = vld [vmem:[#allocation9 + $0x80] sm:$0xff]
        %v789 = vld [vmem:[#allocation9 + $0x88] sm:$0xff]
        %v790 = vld [vmem:[#allocation9 + $0x90] sm:$0xff]
        %v791 = vld [vmem:[#allocation9 + $0x98] sm:$0xff]
        %v792 = vld [vmem:[#allocation9 + $0xa0] sm:$0xff]
        %v793 = vld [vmem:[#allocation9 + $0xa8] sm:$0xff]
        %v794 = vld [vmem:[#allocation9 + $0xb0] sm:$0xff]
        %v795 = vld [vmem:[#allocation9 + $0xb8] sm:$0xff]
        %v796 = vld [vmem:[#allocation9 + $0xc0] sm:$0xff]
        %v797 = vld [vmem:[#allocation9 + $0xc8] sm:$0xff]
        %v798 = vld [vmem:[#allocation9 + $0xd0] sm:$0xff]
        %v799 = vld [vmem:[#allocation9 + $0xd8] sm:$0xff]
        %v800 = vld [vmem:[#allocation9 + $0xe0] sm:$0xff]
        %v801 = vld [vmem:[#allocation9 + $0xe8] sm:$0xff]
        %v802 = vld [vmem:[#allocation9 + $0xf0] sm:$0xff]
        %v803 = vld [vmem:[#allocation9 + $0xf8] sm:$0xff]
        %v804 = vld [vmem:[#allocation11] sm:$0x3]
        %v806 = vlaneseq
        %v807 = vshrl.u32 %v806, 7
        %v808 = vsub.s32 0, %v807
        %v809 = vrot.slane %v804, %v808
        %v810 = vlaneseq
        %v811 = vshrl.u32 %v810, 7
        %v812 = vsub.s32 1, %v811
        %v813 = vrot.slane %v804, %v812
        %v848 = vunpack.c.l.b16 %v772
        %v849 = vunpack.c.h.b16 %v772
        %v850 = vunpack.c.l.b16 %v773
        %v851 = vunpack.c.h.b16 %v773
        %v852 = vunpack.c.l.b16 %v774
        %v853 = vunpack.c.h.b16 %v774
        %v854 = vunpack.c.l.b16 %v775
        %v855 = vunpack.c.h.b16 %v775
        %v856 = vunpack.c.l.b16 %v776
        %v857 = vunpack.c.h.b16 %v776
        %v858 = vunpack.c.l.b16 %v777
        %v859 = vunpack.c.h.b16 %v777
        %v860 = vunpack.c.l.b16 %v778
        %v861 = vunpack.c.h.b16 %v778
        %v862 = vunpack.c.l.b16 %v779
        %v863 = vunpack.c.h.b16 %v779
        %v864 = vunpack.c.l.b16 %v780
        %v865 = vunpack.c.h.b16 %v780
        %v866 = vunpack.c.l.b16 %v781
        %v867 = vunpack.c.h.b16 %v781
        %v868 = vunpack.c.l.b16 %v782
        %v869 = vunpack.c.h.b16 %v782
        %v870 = vunpack.c.l.b16 %v783
        %v871 = vunpack.c.h.b16 %v783
        %v872 = vunpack.c.l.b16 %v784
        %v873 = vunpack.c.h.b16 %v784
        %v874 = vunpack.c.l.b16 %v785
        %v875 = vunpack.c.h.b16 %v785
        %v876 = vunpack.c.l.b16 %v786
        %v877 = vunpack.c.h.b16 %v786
        %v878 = vunpack.c.l.b16 %v787
        %v879 = vunpack.c.h.b16 %v787
        %v880 = vunpack.c.l.b16 %v788
        %v881 = vunpack.c.h.b16 %v788
        %v882 = vunpack.c.l.b16 %v789
        %v883 = vunpack.c.h.b16 %v789
        %v884 = vunpack.c.l.b16 %v790
        %v885 = vunpack.c.h.b16 %v790
        %v886 = vunpack.c.l.b16 %v791
        %v887 = vunpack.c.h.b16 %v791
        %v888 = vunpack.c.l.b16 %v792
        %v889 = vunpack.c.h.b16 %v792
        %v890 = vunpack.c.l.b16 %v793
        %v891 = vunpack.c.h.b16 %v793
        %v892 = vunpack.c.l.b16 %v794
        %v893 = vunpack.c.h.b16 %v794
        %v894 = vunpack.c.l.b16 %v795
        %v895 = vunpack.c.h.b16 %v795
        %v896 = vunpack.c.l.b16 %v796
        %v897 = vunpack.c.h.b16 %v796
        %v898 = vunpack.c.l.b16 %v797
        %v899 = vunpack.c.h.b16 %v797
        %v900 = vunpack.c.l.b16 %v798
        %v901 = vunpack.c.h.b16 %v798
        %v902 = vunpack.c.l.b16 %v799
        %v903 = vunpack.c.h.b16 %v799
        %v904 = vunpack.c.l.b16 %v800
        %v905 = vunpack.c.h.b16 %v800
        %v906 = vunpack.c.l.b16 %v801
        %v907 = vunpack.c.h.b16 %v801
        %v908 = vunpack.c.l.b16 %v802
        %v909 = vunpack.c.h.b16 %v802
        %v910 = vunpack.c.l.b16 %v803
        %v911 = vunpack.c.h.b16 %v803
        %v912 = vpack.c.b16 %v850, %v848
        %v913 = vpack.c.b16 %v851, %v849
        %v914 = vpack.c.b16 %v854, %v852
        %v915 = vpack.c.b16 %v855, %v853
        %v916 = vpack.c.b16 %v858, %v856
        %v917 = vpack.c.b16 %v859, %v857
        %v918 = vpack.c.b16 %v862, %v860
        %v919 = vpack.c.b16 %v863, %v861
        %v920 = vpack.c.b16 %v866, %v864
        %v921 = vpack.c.b16 %v867, %v865
        %v922 = vpack.c.b16 %v870, %v868
        %v923 = vpack.c.b16 %v871, %v869
        %v924 = vpack.c.b16 %v874, %v872
        %v925 = vpack.c.b16 %v875, %v873
        %v926 = vpack.c.b16 %v878, %v876
        %v927 = vpack.c.b16 %v879, %v877
        %v928 = vpack.c.b16 %v882, %v880
        %v929 = vpack.c.b16 %v883, %v881
        %v930 = vpack.c.b16 %v886, %v884
        %v931 = vpack.c.b16 %v887, %v885
        %v932 = vpack.c.b16 %v890, %v888
        %v933 = vpack.c.b16 %v891, %v889
        %v934 = vpack.c.b16 %v894, %v892
        %v935 = vpack.c.b16 %v895, %v893
        %v936 = vpack.c.b16 %v898, %v896
        %v937 = vpack.c.b16 %v899, %v897
        %v938 = vpack.c.b16 %v902, %v900
        %v939 = vpack.c.b16 %v903, %v901
        %v940 = vpack.c.b16 %v906, %v904
        %v941 = vpack.c.b16 %v907, %v905
        %v942 = vpack.c.b16 %v910, %v908
        %v943 = vpack.c.b16 %v911, %v909
        %976 = vmatprep.subr.bf16.mxu0 %v913
        %977 = vmatpush1.bf16.msra.mxu0 %v912
        %978 = vmatprep.subr.bf16.mxu0 %v915
        %979 = vmatpush1.bf16.msra.mxu0 %v914
        %980 = vmatprep.subr.bf16.mxu0 %v917
        %981 = vmatpush1.bf16.msra.mxu0 %v916
        %982 = vmatprep.subr.bf16.mxu0 %v919
        %983 = vmatpush1.bf16.msra.mxu0 %v918
        %984 = vmatprep.subr.bf16.mxu0 %v921
        %985 = vmatpush1.bf16.msra.mxu0 %v920
        %986 = vmatprep.subr.bf16.mxu0 %v923
        %987 = vmatpush1.bf16.msra.mxu0 %v922
        %988 = vmatprep.subr.bf16.mxu0 %v925
        %989 = vmatpush1.bf16.msra.mxu0 %v924
        %990 = vmatprep.subr.bf16.mxu0 %v927
        %991 = vmatpush1.bf16.msra.mxu0 %v926
        %992 = vmatprep.subr.bf16.mxu0 %v929
        %993 = vmatpush1.bf16.msra.mxu0 %v928
        %994 = vmatprep.subr.bf16.mxu0 %v931
        %995 = vmatpush1.bf16.msra.mxu0 %v930
        %996 = vmatprep.subr.bf16.mxu0 %v933
        %997 = vmatpush1.bf16.msra.mxu0 %v932
        %998 = vmatprep.subr.bf16.mxu0 %v935
        %999 = vmatpush1.bf16.msra.mxu0 %v934
        %1000 = vmatprep.subr.bf16.mxu0 %v937
        %1001 = vmatpush1.bf16.msra.mxu0 %v936
        %1002 = vmatprep.subr.bf16.mxu0 %v939
        %1003 = vmatpush1.bf16.msra.mxu0 %v938
        %1004 = vmatprep.subr.bf16.mxu0 %v941
        %1005 = vmatpush1.bf16.msra.mxu0 %v940
        %1006 = vmatprep.subr.bf16.mxu0 %v943
        %1007 = vmatpush1.bf16.msra.mxu0 %v942
        %1008 = vmatprep.mubr.bf16.mxu0 %v757
        %1009 = vmatmul.mubr.bf16.gmra.mrb[0].mxu0 %v756
        %v1010 = vpop.f32.mrb[0].mxu0
        %v1011 = vadd.f32 %v809, %v1010
        %v1012 = vpop.f32.mrb[0].mxu0
        %v1013 = vadd.f32 %v813, %v1012
        %v1014 = vpop.f32.mrb[0].mxu0
        %v1015 = vadd.f32 %v809, %v1014
        %v1016 = vpop.f32.mrb[0].mxu0
        %v1017 = vadd.f32 %v813, %v1016
        %1018 = vmatprep.mubr.bf16.mxu0 %v759
        %1019 = vmatmul.mubr.bf16.gmra.mrb[0].mxu0 %v758
        %v1020 = vpop.f32.mrb[0].mxu0
        %v1021 = vadd.f32 %v809, %v1020
        %v1022 = vpop.f32.mrb[0].mxu0
        %v1023 = vadd.f32 %v813, %v1022
        %v1024 = vpop.f32.mrb[0].mxu0
        %v1025 = vadd.f32 %v809, %v1024
        %v1026 = vpop.f32.mrb[0].mxu0
        %v1027 = vadd.f32 %v813, %v1026
        %1028 = vmatprep.mubr.bf16.mxu0 %v761
        %1029 = vmatmul.mubr.bf16.gmra.mrb[0].mxu0 %v760
        %v1030 = vpop.f32.mrb[0].mxu0
        %v1031 = vadd.f32 %v809, %v1030
        %v1032 = vpop.f32.mrb[0].mxu0
        %v1033 = vadd.f32 %v813, %v1032
        %v1034 = vpop.f32.mrb[0].mxu0
        %v1035 = vadd.f32 %v809, %v1034
        %v1036 = vpop.f32.mrb[0].mxu0
        %v1037 = vadd.f32 %v813, %v1036
        %1038 = vmatprep.mubr.bf16.mxu0 %v763
        %1039 = vmatmul.mubr.bf16.gmra.mrb[0].mxu0 %v762
        %v1040 = vpop.f32.mrb[0].mxu0
        %v1041 = vadd.f32 %v809, %v1040
        %v1042 = vpop.f32.mrb[0].mxu0
        %v1043 = vadd.f32 %v813, %v1042
        %v1044 = vpop.f32.mrb[0].mxu0
        %v1045 = vadd.f32 %v809, %v1044
        %v1046 = vpop.f32.mrb[0].mxu0
        %v1047 = vadd.f32 %v813, %v1046
        %1048 = vmatprep.mubr.bf16.mxu0 %v765
        %1049 = vmatmul.mubr.bf16.gmra.mrb[0].mxu0 %v764
        %v1050 = vpop.f32.mrb[0].mxu0
        %v1051 = vadd.f32 %v809, %v1050
        %v1052 = vpop.f32.mrb[0].mxu0
        %v1053 = vadd.f32 %v813, %v1052
        %v1054 = vpop.f32.mrb[0].mxu0
        %v1055 = vadd.f32 %v809, %v1054
        %v1056 = vpop.f32.mrb[0].mxu0
        %v1057 = vadd.f32 %v813, %v1056
        %1058 = vmatprep.mubr.bf16.mxu0 %v767
        %1059 = vmatmul.mubr.bf16.gmra.mrb[0].mxu0 %v766
        %v1060 = vpop.f32.mrb[0].mxu0
        %v1061 = vadd.f32 %v809, %v1060
        %v1062 = vpop.f32.mrb[0].mxu0
        %v1063 = vadd.f32 %v813, %v1062
        %v1064 = vpop.f32.mrb[0].mxu0
        %v1065 = vadd.f32 %v809, %v1064
        %v1066 = vpop.f32.mrb[0].mxu0
        %v1067 = vadd.f32 %v813, %v1066
        %1068 = vmatprep.mubr.bf16.mxu0 %v769
        %1069 = vmatmul.mubr.bf16.gmra.mrb[0].mxu0 %v768
        %v1070 = vpop.f32.mrb[0].mxu0
        %v1071 = vadd.f32 %v809, %v1070
        %v1072 = vpop.f32.mrb[0].mxu0
        %v1073 = vadd.f32 %v813, %v1072
        %v1074 = vpop.f32.mrb[0].mxu0
        %v1075 = vadd.f32 %v809, %v1074
        %v1076 = vpop.f32.mrb[0].mxu0
        %v1077 = vadd.f32 %v813, %v1076
        %1078 = vmatprep.mubr.bf16.mxu0 %v771
        %1079 = vmatmul.mubr.bf16.gmra.mrb[0].mxu0 %v770
        %v1080 = vpop.f32.mrb[0].mxu0
        %v1081 = vadd.f32 %v809, %v1080
        %v1082 = vpop.f32.mrb[0].mxu0
        %v1083 = vadd.f32 %v813, %v1082
        %v1084 = vpop.f32.mrb[0].mxu0
        %v1085 = vadd.f32 %v809, %v1084
        %v1086 = vpop.f32.mrb[0].mxu0
        %v1087 = vadd.f32 %v813, %v1086
        %1088 = vdwg.mxu0
        %v1089 = vmax.f32 %v1011, 0.0
        %v1090 = vmax.f32 %v1013, 0.0
        %v1091 = vmax.f32 %v1015, 0.0
        %v1092 = vmax.f32 %v1017, 0.0
        %v1093 = vmax.f32 %v1021, 0.0
        %v1094 = vmax.f32 %v1023, 0.0
        %v1095 = vmax.f32 %v1025, 0.0
        %v1096 = vmax.f32 %v1027, 0.0
        %v1097 = vmax.f32 %v1031, 0.0
        %v1098 = vmax.f32 %v1033, 0.0
        %v1099 = vmax.f32 %v1035, 0.0
        %v1100 = vmax.f32 %v1037, 0.0
        %v1101 = vmax.f32 %v1041, 0.0
        %v1102 = vmax.f32 %v1043, 0.0
        %v1103 = vmax.f32 %v1045, 0.0
        %v1104 = vmax.f32 %v1047, 0.0
        %v1105 = vmax.f32 %v1051, 0.0
        %v1106 = vmax.f32 %v1053, 0.0
        %v1107 = vmax.f32 %v1055, 0.0
        %v1108 = vmax.f32 %v1057, 0.0
        %v1109 = vmax.f32 %v1061, 0.0
        %v1110 = vmax.f32 %v1063, 0.0
        %v1111 = vmax.f32 %v1065, 0.0
        %v1112 = vmax.f32 %v1067, 0.0
        %v1113 = vmax.f32 %v1071, 0.0
        %v1114 = vmax.f32 %v1073, 0.0
        %v1115 = vmax.f32 %v1075, 0.0
        %v1116 = vmax.f32 %v1077, 0.0
        %v1117 = vmax.f32 %v1081, 0.0
        %v1118 = vmax.f32 %v1083, 0.0
        %v1119 = vmax.f32 %v1085, 0.0
        %v1120 = vmax.f32 %v1087, 0.0
        %vm1121 = vcmask 1045504
        %v1122 = vsel %vm1121, %v1091, -inf
        %v1123 = vmax.f32 %v1089, %v1122
        %v1124 = vrot.slane %v1123, 4
        %v1125 = vmax.f32 %v1123, %v1124
        %v1126 = vrot.slane %v1125, 2
        %v1127 = vmax.f32 %v1125, %v1126
        %v1128 = vrot.slane %v1127, 1
        %v1129 = vmax.f32 %v1127, %v1128
        %v1130 = vsel %vm1121, %v1092, -inf
        %v1131 = vmax.f32 %v1090, %v1130
        %v1132 = vrot.slane %v1131, 4
        %v1133 = vmax.f32 %v1131, %v1132
        %v1134 = vrot.slane %v1133, 2
        %v1135 = vmax.f32 %v1133, %v1134
        %v1136 = vrot.slane %v1135, 1
        %v1137 = vmax.f32 %v1135, %v1136
        %v1138 = vsel %vm1121, %v1095, -inf
        %v1139 = vmax.f32 %v1093, %v1138
        %v1140 = vrot.slane %v1139, 4
        %v1141 = vmax.f32 %v1139, %v1140
        %v1142 = vrot.slane %v1141, 2
        %v1143 = vmax.f32 %v1141, %v1142
        %v1144 = vrot.slane %v1143, 1
        %v1145 = vmax.f32 %v1143, %v1144
        %v1146 = vsel %vm1121, %v1096, -inf
        %v1147 = vmax.f32 %v1094, %v1146
        %v1148 = vrot.slane %v1147, 4
        %v1149 = vmax.f32 %v1147, %v1148
        %v1150 = vrot.slane %v1149, 2
        %v1151 = vmax.f32 %v1149, %v1150
        %v1152 = vrot.slane %v1151, 1
        %v1153 = vmax.f32 %v1151, %v1152
        %v1154 = vsel %vm1121, %v1099, -inf
        %v1155 = vmax.f32 %v1097, %v1154
        %v1156 = vrot.slane %v1155, 4
        %v1157 = vmax.f32 %v1155, %v1156
        %v1158 = vrot.slane %v1157, 2
        %v1159 = vmax.f32 %v1157, %v1158
        %v1160 = vrot.slane %v1159, 1
        %v1161 = vmax.f32 %v1159, %v1160
        %v1162 = vsel %vm1121, %v1100, -inf
        %v1163 = vmax.f32 %v1098, %v1162
        %v1164 = vrot.slane %v1163, 4
        %v1165 = vmax.f32 %v1163, %v1164
        %v1166 = vrot.slane %v1165, 2
        %v1167 = vmax.f32 %v1165, %v1166
        %v1168 = vrot.slane %v1167, 1
        %v1169 = vmax.f32 %v1167, %v1168
        %v1170 = vsel %vm1121, %v1103, -inf
        %v1171 = vmax.f32 %v1101, %v1170
        %v1172 = vrot.slane %v1171, 4
        %v1173 = vmax.f32 %v1171, %v1172
        %v1174 = vrot.slane %v1173, 2
        %v1175 = vmax.f32 %v1173, %v1174
        %v1176 = vrot.slane %v1175, 1
        %v1177 = vmax.f32 %v1175, %v1176
        %v1178 = vsel %vm1121, %v1104, -inf
        %v1179 = vmax.f32 %v1102, %v1178
        %v1180 = vrot.slane %v1179, 4
        %v1181 = vmax.f32 %v1179, %v1180
        %v1182 = vrot.slane %v1181, 2
        %v1183 = vmax.f32 %v1181, %v1182
        %v1184 = vrot.slane %v1183, 1
        %v1185 = vmax.f32 %v1183, %v1184
        %v1186 = vsel %vm1121, %v1107, -inf
        %v1187 = vmax.f32 %v1105, %v1186
        %v1188 = vrot.slane %v1187, 4
        %v1189 = vmax.f32 %v1187, %v1188
        %v1190 = vrot.slane %v1189, 2
        %v1191 = vmax.f32 %v1189, %v1190
        %v1192 = vrot.slane %v1191, 1
        %v1193 = vmax.f32 %v1191, %v1192
        %v1194 = vsel %vm1121, %v1108, -inf
        %v1195 = vmax.f32 %v1106, %v1194
        %v1196 = vrot.slane %v1195, 4
        %v1197 = vmax.f32 %v1195, %v1196
        %v1198 = vrot.slane %v1197, 2
        %v1199 = vmax.f32 %v1197, %v1198
        %v1200 = vrot.slane %v1199, 1
        %v1201 = vmax.f32 %v1199, %v1200
        %v1202 = vsel %vm1121, %v1111, -inf
        %v1203 = vmax.f32 %v1109, %v1202
        %v1204 = vrot.slane %v1203, 4
        %v1205 = vmax.f32 %v1203, %v1204
        %v1206 = vrot.slane %v1205, 2
        %v1207 = vmax.f32 %v1205, %v1206
        %v1208 = vrot.slane %v1207, 1
        %v1209 = vmax.f32 %v1207, %v1208
        %v1210 = vsel %vm1121, %v1112, -inf
        %v1211 = vmax.f32 %v1110, %v1210
        %v1212 = vrot.slane %v1211, 4
        %v1213 = vmax.f32 %v1211, %v1212
        %v1214 = vrot.slane %v1213, 2
        %v1215 = vmax.f32 %v1213, %v1214
        %v1216 = vrot.slane %v1215, 1
        %v1217 = vmax.f32 %v1215, %v1216
        %v1218 = vsel %vm1121, %v1115, -inf
        %v1219 = vmax.f32 %v1113, %v1218
        %v1220 = vrot.slane %v1219, 4
        %v1221 = vmax.f32 %v1219, %v1220
        %v1222 = vrot.slane %v1221, 2
        %v1223 = vmax.f32 %v1221, %v1222
        %v1224 = vrot.slane %v1223, 1
        %v1225 = vmax.f32 %v1223, %v1224
        %v1226 = vsel %vm1121, %v1116, -inf
        %v1227 = vmax.f32 %v1114, %v1226
        %v1228 = vrot.slane %v1227, 4
        %v1229 = vmax.f32 %v1227, %v1228
        %v1230 = vrot.slane %v1229, 2
        %v1231 = vmax.f32 %v1229, %v1230
        %v1232 = vrot.slane %v1231, 1
        %v1233 = vmax.f32 %v1231, %v1232
        %v1234 = vsel %vm1121, %v1119, -inf
        %v1235 = vmax.f32 %v1117, %v1234
        %v1236 = vrot.slane %v1235, 4
        %v1237 = vmax.f32 %v1235, %v1236
        %v1238 = vrot.slane %v1237, 2
        %v1239 = vmax.f32 %v1237, %v1238
        %v1240 = vrot.slane %v1239, 1
        %v1241 = vmax.f32 %v1239, %v1240
        %v1242 = vsel %vm1121, %v1120, -inf
        %v1243 = vmax.f32 %v1118, %v1242
        %v1244 = vrot.slane %v1243, 4
        %v1245 = vmax.f32 %v1243, %v1244
        %v1246 = vrot.slane %v1245, 2
        %v1247 = vmax.f32 %v1245, %v1246
        %v1248 = vrot.slane %v1247, 1
        %v1249 = vmax.f32 %v1247, %v1248
        %v1250 = vpack.c.bf16 %v1129, %v1129
        %v1251 = vpack.c.bf16 %v1137, %v1137
        %v1252 = vpack.c.bf16 %v1145, %v1145
        %v1253 = vpack.c.bf16 %v1153, %v1153
        %v1254 = vpack.c.bf16 %v1161, %v1161
        %v1255 = vpack.c.bf16 %v1169, %v1169
        %v1256 = vpack.c.bf16 %v1177, %v1177
        %v1257 = vpack.c.bf16 %v1185, %v1185
        %v1258 = vpack.c.bf16 %v1193, %v1193
        %v1259 = vpack.c.bf16 %v1201, %v1201
        %v1260 = vpack.c.bf16 %v1209, %v1209
        %v1261 = vpack.c.bf16 %v1217, %v1217
        %v1262 = vpack.c.bf16 %v1225, %v1225
        %v1263 = vpack.c.bf16 %v1233, %v1233
        %v1264 = vpack.c.bf16 %v1241, %v1241
        %v1265 = vpack.c.bf16 %v1249, %v1249
        %v1266 = vld [vmem:[#allocation12] sm:$0xf]
        %v1267 = vld [vmem:[#allocation12 + $0x4] sm:$0xf]
        %v1268 = vld [vmem:[#allocation12 + $0x8] sm:$0xf]
        %v1269 = vld [vmem:[#allocation12 + $0xc] sm:$0xf]
        %v1270 = vld [vmem:[#allocation12 + $0x10] sm:$0xf]
        %v1271 = vld [vmem:[#allocation12 + $0x14] sm:$0xf]
        %v1272 = vld [vmem:[#allocation12 + $0x18] sm:$0xf]
        %v1273 = vld [vmem:[#allocation12 + $0x1c] sm:$0xf]
        %v1274 = vld [vmem:[#allocation12 + $0x20] sm:$0xf]
        %v1275 = vld [vmem:[#allocation12 + $0x24] sm:$0xf]
        %v1276 = vld [vmem:[#allocation12 + $0x28] sm:$0xf]
        %v1277 = vld [vmem:[#allocation12 + $0x2c] sm:$0xf]
        %v1278 = vld [vmem:[#allocation12 + $0x30] sm:$0xf]
        %v1279 = vld [vmem:[#allocation12 + $0x34] sm:$0xf]
        %v1280 = vld [vmem:[#allocation12 + $0x38] sm:$0xf]
        %v1281 = vld [vmem:[#allocation12 + $0x3c] sm:$0xf]
        %v1282 = vld [vmem:[#allocation12 + $0x40] sm:$0xf]
        %v1283 = vld [vmem:[#allocation12 + $0x44] sm:$0xf]
        %v1284 = vld [vmem:[#allocation12 + $0x48] sm:$0xf]
        %v1285 = vld [vmem:[#allocation12 + $0x4c] sm:$0xf]
        %v1286 = vld [vmem:[#allocation12 + $0x50] sm:$0xf]
        %v1287 = vld [vmem:[#allocation12 + $0x54] sm:$0xf]
        %v1288 = vld [vmem:[#allocation12 + $0x58] sm:$0xf]
        %v1289 = vld [vmem:[#allocation12 + $0x5c] sm:$0xf]
        %v1290 = vld [vmem:[#allocation12 + $0x60] sm:$0xf]
        %v1291 = vld [vmem:[#allocation12 + $0x64] sm:$0xf]
        %v1292 = vld [vmem:[#allocation12 + $0x68] sm:$0xf]
        %v1293 = vld [vmem:[#allocation12 + $0x6c] sm:$0xf]
        %v1294 = vld [vmem:[#allocation12 + $0x70] sm:$0xf]
        %v1295 = vld [vmem:[#allocation12 + $0x74] sm:$0xf]
        %v1296 = vld [vmem:[#allocation12 + $0x78] sm:$0xf]
        %v1297 = vld [vmem:[#allocation12 + $0x7c] sm:$0xf]
        %v1298 = vld [vmem:[#allocation14] sm:$0x1]
        %v1300 = vlaneseq
        %v1301 = vshrl.u32 %v1300, 7
        %v1302 = vsub.s32 0, %v1301
        %v1303 = vrot.slane %v1298, %v1302
        %v1321 = vunpack.c.l.b16 %v1250
        %v1322 = vunpack.c.l.b16 %v1251
        %v1323 = vunpack.c.l.b16 %v1252
        %v1324 = vunpack.c.l.b16 %v1253
        %v1325 = vunpack.c.l.b16 %v1254
        %v1326 = vunpack.c.l.b16 %v1255
        %v1327 = vunpack.c.l.b16 %v1256
        %v1328 = vunpack.c.l.b16 %v1257
        %v1329 = vunpack.c.l.b16 %v1258
        %v1330 = vunpack.c.l.b16 %v1259
        %v1331 = vunpack.c.l.b16 %v1260
        %v1332 = vunpack.c.l.b16 %v1261
        %v1333 = vunpack.c.l.b16 %v1262
        %v1334 = vunpack.c.l.b16 %v1263
        %v1335 = vunpack.c.l.b16 %v1264
        %v1336 = vunpack.c.l.b16 %v1265
        %vm1337 = vcmask 1041409
        %v1338 = vsel %vm1337, %v1323, %v1321
        %vm1339 = vcmask 1042434
        %v1340 = vsel %vm1339, %v1325, %v1338
        %vm1341 = vcmask 1043459
        %v1342 = vsel %vm1341, %v1327, %v1340
        %vm1343 = vcmask 1044484
        %v1344 = vsel %vm1343, %v1329, %v1342
        %vm1345 = vcmask 1045509
        %v1346 = vsel %vm1345, %v1331, %v1344
        %vm1347 = vcmask 1046534
        %v1348 = vsel %vm1347, %v1333, %v1346
        %vm1349 = vcmask 1047559
        %v1350 = vsel %vm1349, %v1335, %v1348
        %v1351 = vsel %vm1337, %v1324, %v1322
        %v1352 = vsel %vm1339, %v1326, %v1351
        %v1353 = vsel %vm1341, %v1328, %v1352
        %v1354 = vsel %vm1343, %v1330, %v1353
        %v1355 = vsel %vm1345, %v1332, %v1354
        %v1356 = vsel %vm1347, %v1334, %v1355
        %v1357 = vsel %vm1349, %v1336, %v1356
        %v1358 = vpack.c.b16 %v1350, %v1350
        %v1359 = vpack.c.b16 %v1357, %v1357
        %v1394 = vunpack.c.l.b16 %v1266
        %v1395 = vunpack.c.l.b16 %v1267
        %v1396 = vunpack.c.l.b16 %v1268
        %v1397 = vunpack.c.l.b16 %v1269
        %v1398 = vunpack.c.l.b16 %v1270
        %v1399 = vunpack.c.l.b16 %v1271
        %v1400 = vunpack.c.l.b16 %v1272
        %v1401 = vunpack.c.l.b16 %v1273
        %v1402 = vunpack.c.l.b16 %v1274
        %v1403 = vunpack.c.l.b16 %v1275
        %v1404 = vunpack.c.l.b16 %v1276
        %v1405 = vunpack.c.l.b16 %v1277
        %v1406 = vunpack.c.l.b16 %v1278
        %v1407 = vunpack.c.l.b16 %v1279
        %v1408 = vunpack.c.l.b16 %v1280
        %v1409 = vunpack.c.l.b16 %v1281
        %v1410 = vunpack.c.l.b16 %v1282
        %v1411 = vunpack.c.l.b16 %v1283
        %v1412 = vunpack.c.l.b16 %v1284
        %v1413 = vunpack.c.l.b16 %v1285
        %v1414 = vunpack.c.l.b16 %v1286
        %v1415 = vunpack.c.l.b16 %v1287
        %v1416 = vunpack.c.l.b16 %v1288
        %v1417 = vunpack.c.l.b16 %v1289
        %v1418 = vunpack.c.l.b16 %v1290
        %v1419 = vunpack.c.l.b16 %v1291
        %v1420 = vunpack.c.l.b16 %v1292
        %v1421 = vunpack.c.l.b16 %v1293
        %v1422 = vunpack.c.l.b16 %v1294
        %v1423 = vunpack.c.l.b16 %v1295
        %v1424 = vunpack.c.l.b16 %v1296
        %v1425 = vunpack.c.l.b16 %v1297
        %v1426 = vpack.c.b16 %v1395, %v1394
        %v1427 = vpack.c.b16 %v1397, %v1396
        %v1428 = vpack.c.b16 %v1399, %v1398
        %v1429 = vpack.c.b16 %v1401, %v1400
        %v1430 = vpack.c.b16 %v1403, %v1402
        %v1431 = vpack.c.b16 %v1405, %v1404
        %v1432 = vpack.c.b16 %v1407, %v1406
        %v1433 = vpack.c.b16 %v1409, %v1408
        %v1434 = vpack.c.b16 %v1411, %v1410
        %v1435 = vpack.c.b16 %v1413, %v1412
        %v1436 = vpack.c.b16 %v1415, %v1414
        %v1437 = vpack.c.b16 %v1417, %v1416
        %v1438 = vpack.c.b16 %v1419, %v1418
        %v1439 = vpack.c.b16 %v1421, %v1420
        %v1440 = vpack.c.b16 %v1423, %v1422
        %v1441 = vpack.c.b16 %v1425, %v1424
        %1458 = vmatprep.subr.bf16.mxu0 0
        %1459 = vmatpush1.bf16.msra.mxu0 %v1426
        %1460 = vmatprep.subr.bf16.mxu0 0
        %1461 = vmatpush1.bf16.msra.mxu0 %v1427
        %1462 = vmatprep.subr.bf16.mxu0 0
        %1463 = vmatpush1.bf16.msra.mxu0 %v1428
        %1464 = vmatprep.subr.bf16.mxu0 0
        %1465 = vmatpush1.bf16.msra.mxu0 %v1429
        %1466 = vmatprep.subr.bf16.mxu0 0
        %1467 = vmatpush1.bf16.msra.mxu0 %v1430
        %1468 = vmatprep.subr.bf16.mxu0 0
        %1469 = vmatpush1.bf16.msra.mxu0 %v1431
        %1470 = vmatprep.subr.bf16.mxu0 0
        %1471 = vmatpush1.bf16.msra.mxu0 %v1432
        %1472 = vmatprep.subr.bf16.mxu0 0
        %1473 = vmatpush1.bf16.msra.mxu0 %v1433
        %1474 = vmatprep.subr.bf16.mxu0 0
        %1475 = vmatpush1.bf16.msra.mxu0 %v1434
        %1476 = vmatprep.subr.bf16.mxu0 0
        %1477 = vmatpush1.bf16.msra.mxu0 %v1435
        %1478 = vmatprep.subr.bf16.mxu0 0
        %1479 = vmatpush1.bf16.msra.mxu0 %v1436
        %1480 = vmatprep.subr.bf16.mxu0 0
        %1481 = vmatpush1.bf16.msra.mxu0 %v1437
        %1482 = vmatprep.subr.bf16.mxu0 0
        %1483 = vmatpush1.bf16.msra.mxu0 %v1438
        %1484 = vmatprep.subr.bf16.mxu0 0
        %1485 = vmatpush1.bf16.msra.mxu0 %v1439
        %1486 = vmatprep.subr.bf16.mxu0 0
        %1487 = vmatpush1.bf16.msra.mxu0 %v1440
        %1488 = vmatprep.subr.bf16.mxu0 0
        %1489 = vmatpush1.bf16.msra.mxu0 %v1441
        %1490 = vmatprep.mubr.bf16.mxu0 %v1359
        %1491 = vmatmul.mubr.bf16.gmra.mrb[0].mxu0 %v1358
        %v1492 = vpop.f32.mrb[0].mxu0
        %v1493 = vadd.f32 %v1303, %v1492
        %v1494 = vpop.f32.mrb[0].mxu0
        %v1495 = vpop.f32.mrb[0].mxu0
        %v1496 = vpop.f32.mrb[0].mxu0
        %1497 = vdwg.mxu0
        %1498 = vst [vmem:[%s376] sm:$0xff] %v1493
        %s1499 = sand.u32 %s187, 1
        %s1500 = scalar_lea.sflag [#allocation5], %s1499
        %s1501 = sand.u32 %s187, 1
        %s1502 = smul.addr %s1501, 8
        %s1503 = scalar_lea.vmem [#allocation15], %s1502
        // Predicated region
        $region77: #{tpu_custom_call.1} parent=47 // pred_check
          %p1504 = pneg %p197
        $region78: #{tpu_custom_call.1} parent=47 // pred_check_branch
          %1506 = sbr.rel (%p1504) target = $region80
        $region79: #{tpu_custom_call.1} parent=47 // pred_region
          %s1508 = ssub.s32 128, 128
          %1509 = vsyncadd %s1500, %s1508
          %s1510 = smul.addr %s27, 128
          %s1511 = scalar_lea.hbm %s7, %s1510
          %s1513 = sshll.u32 %s1503, 4
          %s1514 = int_to_ptr.vmem [resolvable:$true] %s1513
          %1516 = dma.vmem_to_hbm [thread:$0]  %s1514, 128, %s1511, %s1500
        $region80: #{tpu_custom_call.1} parent=47 // pred_fallthru
          _
      $region48: #{tpu_custom_call.1} parent=5 // pred_fallthru
        _
      %p1517 = scmp.le.s32.totalorder 2, %s22
      // Predicated region
      $region81: #{tpu_custom_call.1} parent=5 // pred_check
        %p1518 = pneg %p1517
      $region82: #{tpu_custom_call.1} parent=5 // pred_check_branch
        %1520 = sbr.rel (%p1518) target = $region84
      $region83: #{tpu_custom_call.1} parent=5 // pred_region
        %s1521 = ssub.s32 %s22, 2
        // Predicated region
        $region85: #{tpu_custom_call.1} parent=83 // pred_check
          %p1522 = pneg %p203
        $region86: #{tpu_custom_call.1} parent=83 // pred_check_branch
          %1524 = sbr.rel (%p1522) target = $region88
        $region87: #{tpu_custom_call.1} parent=83 // pred_region
          %s1525 = sand.u32 %s188, 1
          %s1526 = scalar_lea.sflag [#allocation5], %s1525
          %s1527 = sand.u32 %s188, 1
          %s1528 = smul.addr %s1527, 8
          %s1529 = scalar_lea.vmem [#allocation15], %s1528
          %1530 = dma.done %s1526, 128
        $region88: #{tpu_custom_call.1} parent=83 // pred_fallthru
          _
      $region84: #{tpu_custom_call.1} parent=5 // pred_fallthru
        _
    $region6: #{tpu_custom_call.1} parent=1 // loop_footer
      %s26 = sadd.s32 1, %s22
    $region7: #{tpu_custom_call.1} parent=1 // loop_footer_branch
      %21 = sbr.rel target = $region3
    $region8: #{tpu_custom_call.1} parent=1 // loop_exit
      _
    %1531 = vsyncpa [#allocation4], 1
    %s1532 = scalar_lea.sflag [#allocation4], 1
    %1533 = vsyncpa %s1532, 1
    %1534 = vsyncpa [#allocation7], 1
    %1535 = vsyncpa [#allocation10], 1
    %1536 = vsyncpa [#allocation13], 1
    %1537 = vsyncpa [#allocation5], 1
    %s1538 = scalar_lea.sflag [#allocation5], 1
    %1539 = vsyncpa %s1538, 1

</llo_original>
